<compile_context>
chip_gen: v7x
topology: tpu7x:2x2x1
jax: 0.10.0
libtpu: 0.0.40
codegen_flags: <defaults>
</compile_context>

<pallas_src>
import jax
import jax.numpy as jnp
from jax.experimental import pallas as pl
from jax.experimental.pallas import tpu as pltpu


def _round_up(x, m):
    return (x + m - 1) // m * m


# ----------------------------- Pallas kernels ------------------------------

def _make_conv_kernel(w_in, s_out, cin):
    """Fused valid 3x3x3 conv + folded-BN bias + LeakyReLU(0.01).

    Grid: (N, Do, kd).  One step consumes one input depth plane (Cin, S_in)
    with S_in = H*W on the lane axis, builds the 9-tap patch operand
    (9*Cin, S_out) in VMEM scratch (tap shifts = lane rolls) and issues one
    MXU dot (Cout, 9*Cin) @ (9*Cin, S_out), accumulated with a single RMW of
    the f32 accumulator.  Weight / bias / mask have constant index_maps and
    are fetched once; kd is indexed dynamically in-kernel.  Last kd: bias +
    LeakyReLU, zero junk width columns, store the lane-dense bf16 plane.
    """

    def kernel(x_ref, w_ref, b_ref, m_ref, o_ref, acc_ref, p_ref):
        kd = pl.program_id(2)
        x = x_ref[0, 0]                                   # (Cin, S_in) bf16
        for t in range(9):                                # build patch operand
            kh, kw = divmod(t, 3)
            off = kh * w_in + kw
            p_ref[t * cin:(t + 1) * cin, :] = x[:, off:off + s_out]
        contrib = jnp.dot(w_ref[kd], p_ref[...],
                          preferred_element_type=jnp.float32)

        @pl.when(kd == 0)
        def _():
            acc_ref[...] = contrib

        @pl.when(kd != 0)
        def _():
            acc_ref[...] += contrib

        @pl.when(kd == pl.num_programs(2) - 1)
        def _():
            y = acc_ref[...] + b_ref[...]                 # folded-BN bias
            y = jnp.where(y > 0.0, y, 0.01 * y)           # LeakyReLU(0.01)
            y = y * m_ref[...]                            # zero junk columns
            o_ref[0, 0] = y.astype(o_ref.dtype)

    return kernel


def _make_pool_kernel(w_in, len_t):
    """MaxPool3d(2) over a whole depth-pair plane (grid (N, Dp)).

    u = max over the two depth planes; two lane-shifted maxes reduce the
    in-plane 2x2 window; one bf16 selection matmul compacts the strided plane
    into the next layer's compact (C, Hp*Wp) layout.  Maxima and 0/1 selection
    are exact in bf16.
    """

    def kernel(y_ref, s_ref, o_ref):
        u = jnp.maximum(y_ref[0, 0], y_ref[0, 1])                  # (C, S_c)
        v = jnp.maximum(u[:, 0:len_t + w_in], u[:, 1:len_t + w_in + 1])
        t = jnp.maximum(v[:, 0:len_t], v[:, w_in:w_in + len_t])    # 2x2 max
        o_ref[0, 0] = jnp.dot(t, s_ref[...],
                              preferred_element_type=jnp.float32
                              ).astype(o_ref.dtype)

    return kernel


def _head_kernel(x_ref, w1_ref, b1_ref, w2_ref, b2_ref, o_ref, acc_ref):
    """K-tiled Linear(feat,64p) -> LeakyReLU -> Linear(64p,out) -> Sigmoid."""
    k = pl.program_id(0)
    contrib = jnp.dot(x_ref[...], w1_ref[...],
                      preferred_element_type=jnp.float32)

    @pl.when(k == 0)
    def _():
        acc_ref[...] = contrib

    @pl.when(k != 0)
    def _():
        acc_ref[...] += contrib

    @pl.when(k == pl.num_programs(0) - 1)
    def _():
        h = acc_ref[...] + b1_ref[...]
        h = jnp.where(h > 0.0, h, 0.01 * h)
        z = jnp.dot(h, w2_ref[...], preferred_element_type=jnp.float32)
        z = z + b2_ref[...]
        e = jnp.exp(-jnp.abs(z))                    # numerically stable sigmoid
        o_ref[...] = jnp.where(z >= 0.0, 1.0 / (1.0 + e), e / (1.0 + e))


# ------------------------------ kernel wrappers ------------------------------

def _conv_bn_lrelu(x, wt, bias, mask, *, d, h, w):
    """x: (N, D, Cin, H*W) bf16 -> (N, Do, Cout, (Ho-1)*W + Wo) bf16."""
    n, _, cin, s_in = x.shape
    cout = wt.shape[1]
    do, ho, wo = d - 2, h - 2, w - 2
    s_out = (ho - 1) * w + wo
    assert s_in == h * w and mask.shape == (1, s_out)
    return pl.pallas_call(
        _make_conv_kernel(w, s_out, cin),
        out_shape=jax.ShapeDtypeStruct((n, do, cout, s_out), jnp.bfloat16),
        grid=(n, do, 3),
        in_specs=[
            pl.BlockSpec((1, 1, cin, s_in), lambda b, i, k: (b, i + k, 0, 0)),
            pl.BlockSpec((3, cout, 9 * cin), lambda b, i, k: (0, 0, 0)),
            pl.BlockSpec((cout, 1), lambda b, i, k: (0, 0)),
            pl.BlockSpec((1, s_out), lambda b, i, k: (0, 0)),
        ],
        out_specs=pl.BlockSpec((1, 1, cout, s_out),
                               lambda b, i, k: (b, i, 0, 0)),
        scratch_shapes=[pltpu.VMEM((cout, s_out), jnp.float32),
                        pltpu.VMEM((9 * cin, s_out), jnp.bfloat16)],
        compiler_params=pltpu.CompilerParams(
            dimension_semantics=("parallel", "parallel", "arbitrary"),
            vmem_limit_bytes=32 * 1024 * 1024),
    )(x, wt, bias, mask)


def _maxpool2(y, sel, *, do, ho, wo, w_in):
    """y: (N, Do, C, S_c) strided -> (N, Dp, C, Hp*Wp) compact."""
    n, _, c, s_c = y.shape
    dp, hp, wp = do // 2, ho // 2, wo // 2
    len_t = s_c - 1 - w_in
    assert sel.shape == (len_t, hp * wp)
    out = pl.pallas_call(
        _make_pool_kernel(w_in, len_t),
        out_shape=jax.ShapeDtypeStruct((n, dp, c, hp * wp), jnp.bfloat16),
        grid=(n, dp),
        in_specs=[pl.BlockSpec((1, 2, c, s_c), lambda b, i: (b, i, 0, 0)),
                  pl.BlockSpec((len_t, hp * wp), lambda b, i: (0, 0))],
        out_specs=pl.BlockSpec((1, 1, c, hp * wp), lambda b, i: (b, i, 0, 0)),
        compiler_params=pltpu.CompilerParams(
            dimension_semantics=("parallel", "parallel")),
    )(y, sel)
    return out, dp, hp, wp


def _head(xf, w1p, b1, w2p, b2, tk):
    n, kp_pad = xf.shape
    hdim = w1p.shape[1]
    odim = w2p.shape[1]
    assert kp_pad % tk == 0
    # TODO(synk): at full feature_length add pipeline_mode=pl.Buffered(3) on
    # the w1p stream and split K across the two v7x TensorCores.
    return pl.pallas_call(
        _head_kernel,
        out_shape=jax.ShapeDtypeStruct((n, odim), jnp.float32),
        grid=(kp_pad // tk,),
        in_specs=[
            pl.BlockSpec((n, tk), lambda k: (0, k)),
            pl.BlockSpec((tk, hdim), lambda k: (k, 0)),
            pl.BlockSpec((1, hdim), lambda k: (0, 0)),
            pl.BlockSpec((hdim, odim), lambda k: (0, 0)),
            pl.BlockSpec((1, odim), lambda k: (0, 0)),
        ],
        out_specs=pl.BlockSpec((n, odim), lambda k: (0, 0)),
        scratch_shapes=[pltpu.VMEM((n, hdim), jnp.float32)],
        compiler_params=pltpu.CompilerParams(
            dimension_semantics=("arbitrary",)),
    )(xf, w1p, b1, w2p, b2)


# ------------------------------- JAX glue -----------------------------------

def _fold_bn_into_conv(conv_w, gamma, beta, mean, var, eps=1e-5):
    """Fold BN (running stats) scale into the conv weights; return bias."""
    scale = gamma / jnp.sqrt(var + eps)                       # (Cout,)
    bias = (beta - mean * scale).reshape(-1, 1).astype(jnp.float32)
    cout, cin = conv_w.shape[0], conv_w.shape[1]
    w = conv_w * scale[:, None, None, None, None]             # (Cout,Cin,3,3,3)
    w = jnp.transpose(w, (2, 0, 3, 4, 1))                     # (kd,Cout,kh,kw,Cin)
    return w.reshape(3, cout, 9 * cin).astype(jnp.bfloat16), bias


def _width_mask(w_in, wo, s_out):
    s = jnp.arange(s_out)
    return ((s % w_in) < wo).astype(jnp.float32).reshape(1, s_out)


def _pool_sel_matrix(w_in, ho, wo):
    """0/1 matrix selecting the 2x2-window anchors -> compact (Hp*Wp) lanes."""
    hp, wp = ho // 2, wo // 2
    len_t = (ho - 1) * w_in + wo - 1 - w_in
    j = jnp.arange(hp * wp)
    anchors = 2 * (j // wp) * w_in + 2 * (j % wp)
    k = jnp.arange(len_t)[:, None]
    return (k == anchors[None, :]).astype(jnp.bfloat16)


def _pick_k_tile(kp, max_tk=2048):
    """128-aligned K tile + zero-padded K extent (no whole-weight fallback)."""
    if kp <= max_tk:
        tk = _round_up(kp, 128)
        return tk, tk
    return max_tk, _round_up(kp, max_tk)


def _prep_head_weights(l1_w, l1_b, l2_w, l2_b, *, c, dp, hp, wp,
                       hdim_pad=64, max_tk=2048):
    """Permute L1 weight cols (torch (c,d,h,w) -> ours (d,c,h,w)), zero-pad
    hidden dim 50 -> hdim_pad and the K dim to a 128-aligned tile multiple."""
    hdim, feat = l1_w.shape
    assert feat == c * dp * hp * wp, "feature_length mismatch with pooled shape"
    w = l1_w.reshape(hdim, c, dp, hp, wp)
    w = jnp.transpose(w, (0, 2, 1, 3, 4)).reshape(hdim, feat).T   # (feat, 50)
    tk, kp_pad = _pick_k_tile(feat, max_tk)
    w1p = jnp.pad(w, ((0, kp_pad - feat), (0, hdim_pad - hdim)))
    w1p = w1p.astype(jnp.bfloat16)
    b1 = jnp.pad(l1_b, (0, hdim_pad - hdim)).reshape(1, hdim_pad)
    b1 = b1.astype(jnp.float32)
    w2p = jnp.pad(l2_w.T.astype(jnp.float32), ((0, hdim_pad - hdim), (0, 0)))
    b2 = l2_b.reshape(1, -1).astype(jnp.float32)
    return w1p, b1, w2p, b2, tk, kp_pad


def cnn_pre_forward(x_ncdhw, params):
    n, cin, d, h, w = x_ncdhw.shape

    # Pack the raw input into the spatial-on-lanes layout (N, D, C, H*W) bf16.
    x = jnp.transpose(x_ncdhw, (0, 2, 1, 3, 4)).reshape(n, d, cin, h * w)
    x = x.astype(jnp.bfloat16)

    # Block 1: conv1 -> bn1 -> LeakyReLU -> MaxPool3d(2)  (Dropout == identity).
    wt1, bc1 = _fold_bn_into_conv(params['conv1_w'], params['bn1_gamma'],
                                  params['bn1_beta'], params['bn1_mean'],
                                  params['bn1_var'])
    do1, ho1, wo1 = d - 2, h - 2, w - 2
    m1 = _width_mask(w, wo1, (ho1 - 1) * w + wo1)
    y1 = _conv_bn_lrelu(x, wt1, bc1, m1, d=d, h=h, w=w)
    sel1 = _pool_sel_matrix(w, ho1, wo1)
    p1, d_p1, h_p1, w_p1 = _maxpool2(y1, sel1, do=do1, ho=ho1, wo=wo1, w_in=w)

    # Block 2.
    wt2, bc2 = _fold_bn_into_conv(params['conv2_w'], params['bn2_gamma'],
                                  params['bn2_beta'], params['bn2_mean'],
                                  params['bn2_var'])
    do2, ho2, wo2 = d_p1 - 2, h_p1 - 2, w_p1 - 2
    m2 = _width_mask(w_p1, wo2, (ho2 - 1) * w_p1 + wo2)
    y2 = _conv_bn_lrelu(p1, wt2, bc2, m2, d=d_p1, h=h_p1, w=w_p1)
    sel2 = _pool_sel_matrix(w_p1, ho2, wo2)
    p2, d_p2, h_p2, w_p2 = _maxpool2(y2, sel2, do=do2, ho=ho2, wo=wo2,
                                     w_in=w_p1)

    # Head: pooled activations are fully compact, flatten is a free reshape;
    # the L1 weight columns are permuted / zero-padded in glue to match.
    c2 = p2.shape[2]
    feat = d_p2 * c2 * h_p2 * w_p2
    xf = p2.reshape(n, feat)
    w1p, b1, w2p, b2, tk, kp_pad = _prep_head_weights(
        params['l1_w'], params['l1_b'], params['l2_w'], params['l2_b'],
        c=c2, dp=d_p2, hp=h_p2, wp=w_p2)
    xf = jnp.pad(xf, ((0, 0), (0, kp_pad - feat)))
    return _head(xf, w1p, b1, w2p, b2, tk)


# --------------------------- reference / params ------------------------------

def _reference_forward(x, params, eps=1e-5):
    """Pure-JAX (f32) reference of the PyTorch module (inference mode)."""

    def block(y, wkey, bnkey):
        w = params[f'{wkey}_w']
        scale = params[f'{bnkey}_gamma'] / jnp.sqrt(params[f'{bnkey}_var'] + eps)
        shift = params[f'{bnkey}_beta'] - params[f'{bnkey}_mean'] * scale
        y = jax.lax.conv_general_dilated(
            y, w, window_strides=(1, 1, 1), padding='VALID',
            dimension_numbers=('NCDHW', 'OIDHW', 'NCDHW'))
        y = y * scale[None, :, None, None, None] + shift[None, :, None, None, None]
        y = jnp.where(y > 0.0, y, 0.01 * y)
        return jax.lax.reduce_window(y, -jnp.inf, jax.lax.max,
                                     (1, 1, 2, 2, 2), (1, 1, 2, 2, 2), 'VALID')

    y = block(x, 'conv1', 'bn1')
    y = block(y, 'conv2', 'bn2')
    xf = y.reshape(x.shape[0], -1)
    hdn = xf @ params['l1_w'].T + params['l1_b']
    hdn = jnp.where(hdn > 0.0, hdn, 0.01 * hdn)
    z = hdn @ params['l2_w'].T + params['l2_b']
    return jax.nn.sigmoid(z)


def init_params(key, fil_num, in_channels, out_channels, feature_length):
    keys = iter(jax.random.split(key, 16))
    p = {}
    p['conv1_w'] = 0.1 * jax.random.normal(
        next(keys), (fil_num, in_channels, 3, 3, 3), jnp.float32)
    p['conv2_w'] = 0.1 * jax.random.normal(
        next(keys), (2 * fil_num, fil_num, 3, 3, 3), jnp.float32)
    for i, c in ((1, fil_num), (2, 2 * fil_num)):
        p[f'bn{i}_gamma'] = 1.0 + 0.1 * jax.random.normal(next(keys), (c,), jnp.float32)
        p[f'bn{i}_beta'] = 0.1 * jax.random.normal(next(keys), (c,), jnp.float32)
        p[f'bn{i}_mean'] = 0.05 * jax.random.normal(next(keys), (c,), jnp.float32)
        p[f'bn{i}_var'] = 1.0 + 0.1 * jnp.abs(jax.random.normal(next(keys), (c,), jnp.float32))
    p['l1_w'] = 0.05 * jax.random.normal(next(keys), (50, feature_length), jnp.float32)
    p['l1_b'] = 0.01 * jax.random.normal(next(keys), (50,), jnp.float32)
    p['l2_w'] = 0.05 * jax.random.normal(next(keys), (out_channels, 50), jnp.float32)
    p['l2_b'] = 0.01 * jax.random.normal(next(keys), (out_channels,), jnp.float32)
    return p


# ---------------------------------- main ------------------------------------

if __name__ == "__main__":
    key = jax.random.PRNGKey(0)
    kx, kp = jax.random.split(key)

    # Small shapes consistent with the module: batch=2, 1 channel, 14^3 volume.
    # Two (valid conv3 -> pool2) blocks: 14 -> 12 -> 6 -> 4 -> 2 spatially.
    N, Cin, D, H, W = 2, 1, 14, 14, 14
    fil_num, out_channels = 8, 1
    feature_length = 2 * fil_num * 2 * 2 * 2   # analogue of 2*fil_num*28*34*28

    x = jax.random.normal(kx, (N, Cin, D, H, W), jnp.float32)
    params = init_params(kp, fil_num, Cin, out_channels, feature_length)

    out = jax.jit(cnn_pre_forward)(x, params)
    out = jax.block_until_ready(out)
    assert out.shape == (N, out_channels)
    assert bool(jnp.all((out >= 0.0) & (out <= 1.0)))

    ref = _reference_forward(x, params)
    err = float(jnp.max(jnp.abs(out - ref)))
    assert err < 3e-2, f"kernel/reference mismatch: max abs err = {err}"
    print("KERNEL_OK")
</pallas_src>

<mosaic_0001>
module attributes {stable_mosaic.version = 11 : i64} {
  func.func @kernel(%arg0: i32, %arg1: i32, %arg2: i32, %arg3: memref<1x1x1x196xbf16, #tpu.memory_space<vmem>>, %arg4: memref<3x8x9xbf16, #tpu.memory_space<vmem>>, %arg5: memref<8x1xf32, #tpu.memory_space<vmem>>, %arg6: memref<1x166xf32, #tpu.memory_space<vmem>>, %arg7: memref<1x1x8x166xbf16, #tpu.memory_space<vmem>>, %arg8: memref<8x166xf32, #tpu.memory_space<vmem>>, %arg9: memref<9x166xbf16, #tpu.memory_space<vmem>>) attributes {dimension_semantics = [#tpu.dimension_semantics<parallel>, #tpu.dimension_semantics<parallel>, #tpu.dimension_semantics<arbitrary>], iteration_bounds = array<i64: 2, 12, 3>, scalar_prefetch = 0 : i64, scratch_operands = 2 : i64, tpu.core_type = #tpu.core_type<tc>, window_params = [{transform_indices = @transform_0, window_bounds = array<i64: 1, 1, 1, 196>}, {pipeline_mode = #tpu.pipeline_mode<synchronous>, transform_indices = @transform_1, window_bounds = array<i64: 3, 8, 9>}, {pipeline_mode = #tpu.pipeline_mode<synchronous>, transform_indices = @transform_2, window_bounds = array<i64: 8, 1>}, {pipeline_mode = #tpu.pipeline_mode<synchronous>, transform_indices = @transform_3, window_bounds = array<i64: 1, 166>}, {transform_indices = @transform_4, window_bounds = array<i64: 1, 1, 8, 166>}]} {
    %c0 = arith.constant 0 : index
    %c0_0 = arith.constant 0 : index
    %c0_1 = arith.constant 0 : index
    %c0_2 = arith.constant 0 : index
    %0 = vector.load %arg3[%c0, %c0_0, %c0_1, %c0_2] : memref<1x1x1x196xbf16, #tpu.memory_space<vmem>>, vector<1x1x1x196xbf16>
    %1 = vector.shape_cast %0 : vector<1x1x1x196xbf16> to vector<1x196xbf16>
    %2 = vector.extract_strided_slice %1 {offsets = [0, 0], sizes = [1, 166], strides = [1, 1]} : vector<1x196xbf16> to vector<1x166xbf16>
    %c0_3 = arith.constant 0 : index
    %c0_4 = arith.constant 0 : index
    %3 = vector.load %arg9[%c0_3, %c0_4] : memref<9x166xbf16, #tpu.memory_space<vmem>>, vector<1x166xbf16>
    tpu.vector_store %arg9[%c0_3, %c0_4], %2 {strides = array<i32>} : memref<9x166xbf16, #tpu.memory_space<vmem>>, vector<1x166xbf16>,
    %4 = vector.extract_strided_slice %1 {offsets = [0, 1], sizes = [1, 166], strides = [1, 1]} : vector<1x196xbf16> to vector<1x166xbf16>
    %c1 = arith.constant 1 : index
    %c0_5 = arith.constant 0 : index
    %5 = vector.load %arg9[%c1, %c0_5] : memref<9x166xbf16, #tpu.memory_space<vmem>>, vector<1x166xbf16>
    tpu.vector_store %arg9[%c1, %c0_5], %4 {strides = array<i32>} : memref<9x166xbf16, #tpu.memory_space<vmem>>, vector<1x166xbf16>,
    %6 = vector.extract_strided_slice %1 {offsets = [0, 2], sizes = [1, 166], strides = [1, 1]} : vector<1x196xbf16> to vector<1x166xbf16>
    %c2 = arith.constant 2 : index
    %c0_6 = arith.constant 0 : index
    %7 = vector.load %arg9[%c2, %c0_6] : memref<9x166xbf16, #tpu.memory_space<vmem>>, vector<1x166xbf16>
    tpu.vector_store %arg9[%c2, %c0_6], %6 {strides = array<i32>} : memref<9x166xbf16, #tpu.memory_space<vmem>>, vector<1x166xbf16>,
    %8 = vector.extract_strided_slice %1 {offsets = [0, 14], sizes = [1, 166], strides = [1, 1]} : vector<1x196xbf16> to vector<1x166xbf16>
    %c3 = arith.constant 3 : index
    %c0_7 = arith.constant 0 : index
    %9 = vector.load %arg9[%c3, %c0_7] : memref<9x166xbf16, #tpu.memory_space<vmem>>, vector<1x166xbf16>
    tpu.vector_store %arg9[%c3, %c0_7], %8 {strides = array<i32>} : memref<9x166xbf16, #tpu.memory_space<vmem>>, vector<1x166xbf16>,
    %10 = vector.extract_strided_slice %1 {offsets = [0, 15], sizes = [1, 166], strides = [1, 1]} : vector<1x196xbf16> to vector<1x166xbf16>
    %c4 = arith.constant 4 : index
    %c0_8 = arith.constant 0 : index
    %11 = vector.load %arg9[%c4, %c0_8] : memref<9x166xbf16, #tpu.memory_space<vmem>>, vector<1x166xbf16>
    tpu.vector_store %arg9[%c4, %c0_8], %10 {strides = array<i32>} : memref<9x166xbf16, #tpu.memory_space<vmem>>, vector<1x166xbf16>,
    %12 = vector.extract_strided_slice %1 {offsets = [0, 16], sizes = [1, 166], strides = [1, 1]} : vector<1x196xbf16> to vector<1x166xbf16>
    %c5 = arith.constant 5 : index
    %c0_9 = arith.constant 0 : index
    %13 = vector.load %arg9[%c5, %c0_9] : memref<9x166xbf16, #tpu.memory_space<vmem>>, vector<1x166xbf16>
    tpu.vector_store %arg9[%c5, %c0_9], %12 {strides = array<i32>} : memref<9x166xbf16, #tpu.memory_space<vmem>>, vector<1x166xbf16>,
    %14 = vector.extract_strided_slice %1 {offsets = [0, 28], sizes = [1, 166], strides = [1, 1]} : vector<1x196xbf16> to vector<1x166xbf16>
    %c6 = arith.constant 6 : index
    %c0_10 = arith.constant 0 : index
    %15 = vector.load %arg9[%c6, %c0_10] : memref<9x166xbf16, #tpu.memory_space<vmem>>, vector<1x166xbf16>
    tpu.vector_store %arg9[%c6, %c0_10], %14 {strides = array<i32>} : memref<9x166xbf16, #tpu.memory_space<vmem>>, vector<1x166xbf16>,
    %16 = vector.extract_strided_slice %1 {offsets = [0, 29], sizes = [1, 166], strides = [1, 1]} : vector<1x196xbf16> to vector<1x166xbf16>
    %c7 = arith.constant 7 : index
    %c0_11 = arith.constant 0 : index
    %17 = vector.load %arg9[%c7, %c0_11] : memref<9x166xbf16, #tpu.memory_space<vmem>>, vector<1x166xbf16>
    tpu.vector_store %arg9[%c7, %c0_11], %16 {strides = array<i32>} : memref<9x166xbf16, #tpu.memory_space<vmem>>, vector<1x166xbf16>,
    %18 = vector.extract_strided_slice %1 {offsets = [0, 30], sizes = [1, 166], strides = [1, 1]} : vector<1x196xbf16> to vector<1x166xbf16>
    %c8 = arith.constant 8 : index
    %c0_12 = arith.constant 0 : index
    %19 = vector.load %arg9[%c8, %c0_12] : memref<9x166xbf16, #tpu.memory_space<vmem>>, vector<1x166xbf16>
    tpu.vector_store %arg9[%c8, %c0_12], %18 {strides = array<i32>} : memref<9x166xbf16, #tpu.memory_space<vmem>>, vector<1x166xbf16>,
    %20 = arith.index_cast %arg2 : i32 to index
    %c0_13 = arith.constant 0 : index
    %c0_14 = arith.constant 0 : index
    %21 = vector.load %arg4[%20, %c0_13, %c0_14] : memref<3x8x9xbf16, #tpu.memory_space<vmem>>, vector<1x8x9xbf16>
    %22 = vector.shape_cast %21 : vector<1x8x9xbf16> to vector<8x9xbf16>
    %c0_15 = arith.constant 0 : index
    %c0_16 = arith.constant 0 : index
    %23 = vector.load %arg9[%c0_15, %c0_16] : memref<9x166xbf16, #tpu.memory_space<vmem>>, vector<9x166xbf16>
    %cst = arith.constant dense<0.000000e+00> : vector<8x166xf32>
    %24 = tpu.matmul %22, %23, %cst {dimension_numbers = #tpu.dot_dimension_numbers<[1], [0], [0], [1], [0, 0, 1, 1], [], []>} : vector<8x9xbf16>, vector<9x166xbf16>, vector<8x166xf32> -> vector<8x166xf32>
    %c0_i32 = arith.constant 0 : i32
    %25 = arith.cmpi eq, %arg2, %c0_i32 : i32
    %26 = arith.extui %25 : i1 to i32
    %c0_i32_17 = arith.constant 0 : i32
    %27 = arith.cmpi ne, %26, %c0_i32_17 : i32
    scf.if %27 {
      %c0_21 = arith.constant 0 : index
      %c0_22 = arith.constant 0 : index
      %34 = vector.load %arg8[%c0_21, %c0_22] : memref<8x166xf32, #tpu.memory_space<vmem>>, vector<8x166xf32>
      tpu.vector_store %arg8[%c0_21, %c0_22], %24 {strides = array<i32>} : memref<8x166xf32, #tpu.memory_space<vmem>>, vector<8x166xf32>,
    } else {
    }
    %c0_i32_18 = arith.constant 0 : i32
    %28 = arith.cmpi ne, %arg2, %c0_i32_18 : i32
    %29 = arith.extui %28 : i1 to i32
    %c0_i32_19 = arith.constant 0 : i32
    %30 = arith.cmpi ne, %29, %c0_i32_19 : i32
    scf.if %30 {
      %c0_21 = arith.constant 0 : index
      %c0_22 = arith.constant 0 : index
      %34 = vector.load %arg8[%c0_21, %c0_22] : memref<8x166xf32, #tpu.memory_space<vmem>>, vector<8x166xf32>
      %35 = arith.addf %34, %24 : vector<8x166xf32>
      %c0_23 = arith.constant 0 : index
      %c0_24 = arith.constant 0 : index
      %36 = vector.load %arg8[%c0_23, %c0_24] : memref<8x166xf32, #tpu.memory_space<vmem>>, vector<8x166xf32>
      tpu.vector_store %arg8[%c0_23, %c0_24], %35 {strides = array<i32>} : memref<8x166xf32, #tpu.memory_space<vmem>>, vector<8x166xf32>,
    } else {
    }
    %c2_i32 = arith.constant 2 : i32
    %31 = arith.cmpi eq, %arg2, %c2_i32 : i32
    %32 = arith.extui %31 : i1 to i32
    %c0_i32_20 = arith.constant 0 : i32
    %33 = arith.cmpi ne, %32, %c0_i32_20 : i32
    scf.if %33 {
      %c0_21 = arith.constant 0 : index
      %c0_22 = arith.constant 0 : index
      %34 = vector.load %arg8[%c0_21, %c0_22] : memref<8x166xf32, #tpu.memory_space<vmem>>, vector<8x166xf32>
      %c0_23 = arith.constant 0 : index
      %c0_24 = arith.constant 0 : index
      %35 = vector.load %arg5[%c0_23, %c0_24] : memref<8x1xf32, #tpu.memory_space<vmem>>, vector<8x1xf32>
      %36 = vector.broadcast %35 : vector<8x1xf32> to vector<8x166xf32>
      %37 = arith.addf %34, %36 : vector<8x166xf32>
      %cst_25 = arith.constant 0.000000e+00 : f32
      %38 = vector.broadcast %cst_25 : f32 to vector<8x166xf32>
      %39 = arith.cmpf ogt, %37, %38 : vector<8x166xf32>
      %cst_26 = arith.constant 0.00999999977 : f32
      %40 = vector.broadcast %cst_26 : f32 to vector<8x166xf32>
      %41 = arith.mulf %40, %37 : vector<8x166xf32>
      %42 = arith.select %39, %37, %41 : vector<8x166xi1>, vector<8x166xf32>
      %c0_27 = arith.constant 0 : index
      %c0_28 = arith.constant 0 : index
      %43 = vector.load %arg6[%c0_27, %c0_28] : memref<1x166xf32, #tpu.memory_space<vmem>>, vector<1x166xf32>
      %44 = vector.broadcast %43 : vector<1x166xf32> to vector<8x166xf32>
      %45 = arith.mulf %42, %44 : vector<8x166xf32>
      %46 = arith.truncf %45 : vector<8x166xf32> to vector<8x166xbf16>
      %c0_29 = arith.constant 0 : index
      %c0_30 = arith.constant 0 : index
      %c0_31 = arith.constant 0 : index
      %c0_32 = arith.constant 0 : index
      %47 = vector.load %arg7[%c0_29, %c0_30, %c0_31, %c0_32] : memref<1x1x8x166xbf16, #tpu.memory_space<vmem>>, vector<1x1x8x166xbf16>
      %48 = vector.shape_cast %47 : vector<1x1x8x166xbf16> to vector<8x166xbf16>
      %49 = vector.shape_cast %46 : vector<8x166xbf16> to vector<1x1x8x166xbf16>
      tpu.vector_store %arg7[%c0_29, %c0_30, %c0_31, %c0_32], %49 {strides = array<i32>} : memref<1x1x8x166xbf16, #tpu.memory_space<vmem>>, vector<1x1x8x166xbf16>,
    } else {
    }
    return
  }
  func.func @transform_0(%arg0: i32, %arg1: i32, %arg2: i32) -> (i32, i32, i32, i32) {
    %0 = arith.addi %arg1, %arg2 : i32
    %c0_i32 = arith.constant 0 : i32
    %c0_i32_0 = arith.constant 0 : i32
    %c0_i32_1 = arith.constant 0 : i32
    return %arg0, %0, %c0_i32, %c0_i32_0 : i32, i32, i32, i32
  }
  func.func @transform_1(%arg0: i32, %arg1: i32, %arg2: i32) -> (i32, i32, i32) {
    %c0_i32 = arith.constant 0 : i32
    %c0_i32_0 = arith.constant 0 : i32
    %c0_i32_1 = arith.constant 0 : i32
    %c0_i32_2 = arith.constant 0 : i32
    return %c0_i32, %c0_i32_0, %c0_i32_1 : i32, i32, i32
  }
  func.func @transform_2(%arg0: i32, %arg1: i32, %arg2: i32) -> (i32, i32) {
    %c0_i32 = arith.constant 0 : i32
    %c0_i32_0 = arith.constant 0 : i32
    %c0_i32_1 = arith.constant 0 : i32
    return %c0_i32, %c0_i32_0 : i32, i32
  }
  func.func @transform_3(%arg0: i32, %arg1: i32, %arg2: i32) -> (i32, i32) {
    %c0_i32 = arith.constant 0 : i32
    %c0_i32_0 = arith.constant 0 : i32
    %c0_i32_1 = arith.constant 0 : i32
    return %c0_i32, %c0_i32_0 : i32, i32
  }
  func.func @transform_4(%arg0: i32, %arg1: i32, %arg2: i32) -> (i32, i32, i32, i32) {
    %c0_i32 = arith.constant 0 : i32
    %c0_i32_0 = arith.constant 0 : i32
    %c0_i32_1 = arith.constant 0 : i32
    return %arg0, %arg1, %c0_i32, %c0_i32_0 : i32, i32, i32, i32
  }
}

module attributes {stable_mosaic.version = 11 : i64} {
  func.func @kernel(%arg0: i32, %arg1: i32, %arg2: memref<1x2x8x166xbf16, #tpu.memory_space<vmem>>, %arg3: memref<151x36xbf16, #tpu.memory_space<vmem>>, %arg4: memref<1x1x8x36xbf16, #tpu.memory_space<vmem>>) attributes {dimension_semantics = [#tpu.dimension_semantics<parallel>, #tpu.dimension_semantics<parallel>], iteration_bounds = array<i64: 2, 6>, scalar_prefetch = 0 : i64, scratch_operands = 0 : i64, tpu.core_type = #tpu.core_type<tc>, window_params = [{transform_indices = @transform_0, window_bounds = array<i64: 1, 2, 8, 166>}, {pipeline_mode = #tpu.pipeline_mode<synchronous>, transform_indices = @transform_1, window_bounds = array<i64: 151, 36>}, {transform_indices = @transform_2, window_bounds = array<i64: 1, 1, 8, 36>}]} {
    %c0 = arith.constant 0 : index
    %c0_0 = arith.constant 0 : index
    %c0_1 = arith.constant 0 : index
    %c0_2 = arith.constant 0 : index
    %0 = vector.load %arg2[%c0, %c0_0, %c0_1, %c0_2] : memref<1x2x8x166xbf16, #tpu.memory_space<vmem>>, vector<1x1x8x166xbf16>
    %1 = vector.shape_cast %0 : vector<1x1x8x166xbf16> to vector<8x166xbf16>
    %c0_3 = arith.constant 0 : index
    %c1 = arith.constant 1 : index
    %c0_4 = arith.constant 0 : index
    %c0_5 = arith.constant 0 : index
    %2 = vector.load %arg2[%c0_3, %c1, %c0_4, %c0_5] : memref<1x2x8x166xbf16, #tpu.memory_space<vmem>>, vector<1x1x8x166xbf16>
    %3 = vector.shape_cast %2 : vector<1x1x8x166xbf16> to vector<8x166xbf16>
    %4 = arith.maximumf %1, %3 : vector<8x166xbf16>
    %5 = vector.extract_strided_slice %4 {offsets = [0, 0], sizes = [8, 165], strides = [1, 1]} : vector<8x166xbf16> to vector<8x165xbf16>
    %6 = vector.extract_strided_slice %4 {offsets = [0, 1], sizes = [8, 165], strides = [1, 1]} : vector<8x166xbf16> to vector<8x165xbf16>
    %7 = arith.maximumf %5, %6 : vector<8x165xbf16>
    %8 = vector.extract_strided_slice %7 {offsets = [0, 0], sizes = [8, 151], strides = [1, 1]} : vector<8x165xbf16> to vector<8x151xbf16>
    %9 = vector.extract_strided_slice %7 {offsets = [0, 14], sizes = [8, 151], strides = [1, 1]} : vector<8x165xbf16> to vector<8x151xbf16>
    %10 = arith.maximumf %8, %9 : vector<8x151xbf16>
    %c0_6 = arith.constant 0 : index
    %c0_7 = arith.constant 0 : index
    %11 = vector.load %arg3[%c0_6, %c0_7] : memref<151x36xbf16, #tpu.memory_space<vmem>>, vector<151x36xbf16>
    %cst = arith.constant dense<0.000000e+00> : vector<8x36xf32>
    %12 = tpu.matmul %10, %11, %cst {dimension_numbers = #tpu.dot_dimension_numbers<[1], [0], [0], [1], [0, 0, 1, 1], [], []>} : vector<8x151xbf16>, vector<151x36xbf16>, vector<8x36xf32> -> vector<8x36xf32>
    %13 = arith.truncf %12 : vector<8x36xf32> to vector<8x36xbf16>
    %c0_8 = arith.constant 0 : index
    %c0_9 = arith.constant 0 : index
    %c0_10 = arith.constant 0 : index
    %c0_11 = arith.constant 0 : index
    %14 = vector.load %arg4[%c0_8, %c0_9, %c0_10, %c0_11] : memref<1x1x8x36xbf16, #tpu.memory_space<vmem>>, vector<1x1x8x36xbf16>
    %15 = vector.shape_cast %14 : vector<1x1x8x36xbf16> to vector<8x36xbf16>
    %16 = vector.shape_cast %13 : vector<8x36xbf16> to vector<1x1x8x36xbf16>
    tpu.vector_store %arg4[%c0_8, %c0_9, %c0_10, %c0_11], %16 {strides = array<i32>} : memref<1x1x8x36xbf16, #tpu.memory_space<vmem>>, vector<1x1x8x36xbf16>,
    return
  }
  func.func @transform_0(%arg0: i32, %arg1: i32) -> (i32, i32, i32, i32) {
    %c0_i32 = arith.constant 0 : i32
    %c0_i32_0 = arith.constant 0 : i32
    %c0_i32_1 = arith.constant 0 : i32
    return %arg0, %arg1, %c0_i32, %c0_i32_0 : i32, i32, i32, i32
  }
  func.func @transform_1(%arg0: i32, %arg1: i32) -> (i32, i32) {
    %c0_i32 = arith.constant 0 : i32
    %c0_i32_0 = arith.constant 0 : i32
    %c0_i32_1 = arith.constant 0 : i32
    return %c0_i32, %c0_i32_0 : i32, i32
  }
  func.func @transform_2(%arg0: i32, %arg1: i32) -> (i32, i32, i32, i32) {
    %c0_i32 = arith.constant 0 : i32
    %c0_i32_0 = arith.constant 0 : i32
    %c0_i32_1 = arith.constant 0 : i32
    return %arg0, %arg1, %c0_i32, %c0_i32_0 : i32, i32, i32, i32
  }
}

module attributes {stable_mosaic.version = 11 : i64} {
  func.func @kernel(%arg0: i32, %arg1: i32, %arg2: memref<1x2x16x22xbf16, #tpu.memory_space<vmem>>, %arg3: memref<15x4xbf16, #tpu.memory_space<vmem>>, %arg4: memref<1x1x16x4xbf16, #tpu.memory_space<vmem>>) attributes {dimension_semantics = [#tpu.dimension_semantics<parallel>, #tpu.dimension_semantics<parallel>], iteration_bounds = array<i64: 2, 2>, scalar_prefetch = 0 : i64, scratch_operands = 0 : i64, tpu.core_type = #tpu.core_type<tc>, window_params = [{transform_indices = @transform_0, window_bounds = array<i64: 1, 2, 16, 22>}, {pipeline_mode = #tpu.pipeline_mode<synchronous>, transform_indices = @transform_1, window_bounds = array<i64: 15, 4>}, {transform_indices = @transform_2, window_bounds = array<i64: 1, 1, 16, 4>}]} {
    %c0 = arith.constant 0 : index
    %c0_0 = arith.constant 0 : index
    %c0_1 = arith.constant 0 : index
    %c0_2 = arith.constant 0 : index
    %0 = vector.load %arg2[%c0, %c0_0, %c0_1, %c0_2] : memref<1x2x16x22xbf16, #tpu.memory_space<vmem>>, vector<1x1x16x22xbf16>
    %1 = vector.shape_cast %0 : vector<1x1x16x22xbf16> to vector<16x22xbf16>
    %c0_3 = arith.constant 0 : index
    %c1 = arith.constant 1 : index
    %c0_4 = arith.constant 0 : index
    %c0_5 = arith.constant 0 : index
    %2 = vector.load %arg2[%c0_3, %c1, %c0_4, %c0_5] : memref<1x2x16x22xbf16, #tpu.memory_space<vmem>>, vector<1x1x16x22xbf16>
    %3 = vector.shape_cast %2 : vector<1x1x16x22xbf16> to vector<16x22xbf16>
    %4 = arith.maximumf %1, %3 : vector<16x22xbf16>
    %5 = vector.extract_strided_slice %4 {offsets = [0, 0], sizes = [16, 21], strides = [1, 1]} : vector<16x22xbf16> to vector<16x21xbf16>
    %6 = vector.extract_strided_slice %4 {offsets = [0, 1], sizes = [16, 21], strides = [1, 1]} : vector<16x22xbf16> to vector<16x21xbf16>
    %7 = arith.maximumf %5, %6 : vector<16x21xbf16>
    %8 = vector.extract_strided_slice %7 {offsets = [0, 0], sizes = [16, 15], strides = [1, 1]} : vector<16x21xbf16> to vector<16x15xbf16>
    %9 = vector.extract_strided_slice %7 {offsets = [0, 6], sizes = [16, 15], strides = [1, 1]} : vector<16x21xbf16> to vector<16x15xbf16>
    %10 = arith.maximumf %8, %9 : vector<16x15xbf16>
    %c0_6 = arith.constant 0 : index
    %c0_7 = arith.constant 0 : index
    %11 = vector.load %arg3[%c0_6, %c0_7] : memref<15x4xbf16, #tpu.memory_space<vmem>>, vector<15x4xbf16>
    %cst = arith.constant dense<0.000000e+00> : vector<16x4xf32>
    %12 = tpu.matmul %10, %11, %cst {dimension_numbers = #tpu.dot_dimension_numbers<[1], [0], [0], [1], [0, 0, 1, 1], [], []>} : vector<16x15xbf16>, vector<15x4xbf16>, vector<16x4xf32> -> vector<16x4xf32>
    %13 = arith.truncf %12 : vector<16x4xf32> to vector<16x4xbf16>
    %c0_8 = arith.constant 0 : index
    %c0_9 = arith.constant 0 : index
    %c0_10 = arith.constant 0 : index
    %c0_11 = arith.constant 0 : index
    %14 = vector.load %arg4[%c0_8, %c0_9, %c0_10, %c0_11] : memref<1x1x16x4xbf16, #tpu.memory_space<vmem>>, vector<1x1x16x4xbf16>
    %15 = vector.shape_cast %14 : vector<1x1x16x4xbf16> to vector<16x4xbf16>
    %16 = vector.shape_cast %13 : vector<16x4xbf16> to vector<1x1x16x4xbf16>
    tpu.vector_store %arg4[%c0_8, %c0_9, %c0_10, %c0_11], %16 {strides = array<i32>} : memref<1x1x16x4xbf16, #tpu.memory_space<vmem>>, vector<1x1x16x4xbf16>,
    return
  }
  func.func @transform_0(%arg0: i32, %arg1: i32) -> (i32, i32, i32, i32) {
    %c0_i32 = arith.constant 0 : i32
    %c0_i32_0 = arith.constant 0 : i32
    %c0_i32_1 = arith.constant 0 : i32
    return %arg0, %arg1, %c0_i32, %c0_i32_0 : i32, i32, i32, i32
  }
  func.func @transform_1(%arg0: i32, %arg1: i32) -> (i32, i32) {
    %c0_i32 = arith.constant 0 : i32
    %c0_i32_0 = arith.constant 0 : i32
    %c0_i32_1 = arith.constant 0 : i32
    return %c0_i32, %c0_i32_0 : i32, i32
  }
  func.func @transform_2(%arg0: i32, %arg1: i32) -> (i32, i32, i32, i32) {
    %c0_i32 = arith.constant 0 : i32
    %c0_i32_0 = arith.constant 0 : i32
    %c0_i32_1 = arith.constant 0 : i32
    return %arg0, %arg1, %c0_i32, %c0_i32_0 : i32, i32, i32, i32
  }
}

module attributes {stable_mosaic.version = 11 : i64} {
  func.func @kernel(%arg0: i32, %arg1: i32, %arg2: i32, %arg3: memref<1x1x8x36xbf16, #tpu.memory_space<vmem>>, %arg4: memref<3x16x72xbf16, #tpu.memory_space<vmem>>, %arg5: memref<16x1xf32, #tpu.memory_space<vmem>>, %arg6: memref<1x22xf32, #tpu.memory_space<vmem>>, %arg7: memref<1x1x16x22xbf16, #tpu.memory_space<vmem>>, %arg8: memref<16x22xf32, #tpu.memory_space<vmem>>, %arg9: memref<72x22xbf16, #tpu.memory_space<vmem>>) attributes {dimension_semantics = [#tpu.dimension_semantics<parallel>, #tpu.dimension_semantics<parallel>, #tpu.dimension_semantics<arbitrary>], iteration_bounds = array<i64: 2, 4, 3>, scalar_prefetch = 0 : i64, scratch_operands = 2 : i64, tpu.core_type = #tpu.core_type<tc>, window_params = [{transform_indices = @transform_0, window_bounds = array<i64: 1, 1, 8, 36>}, {pipeline_mode = #tpu.pipeline_mode<synchronous>, transform_indices = @transform_1, window_bounds = array<i64: 3, 16, 72>}, {pipeline_mode = #tpu.pipeline_mode<synchronous>, transform_indices = @transform_2, window_bounds = array<i64: 16, 1>}, {pipeline_mode = #tpu.pipeline_mode<synchronous>, transform_indices = @transform_3, window_bounds = array<i64: 1, 22>}, {transform_indices = @transform_4, window_bounds = array<i64: 1, 1, 16, 22>}]} {
    %c0 = arith.constant 0 : index
    %c0_0 = arith.constant 0 : index
    %c0_1 = arith.constant 0 : index
    %c0_2 = arith.constant 0 : index
    %0 = vector.load %arg3[%c0, %c0_0, %c0_1, %c0_2] : memref<1x1x8x36xbf16, #tpu.memory_space<vmem>>, vector<1x1x8x36xbf16>
    %1 = vector.shape_cast %0 : vector<1x1x8x36xbf16> to vector<8x36xbf16>
    %2 = vector.extract_strided_slice %1 {offsets = [0, 0], sizes = [8, 22], strides = [1, 1]} : vector<8x36xbf16> to vector<8x22xbf16>
    %c0_3 = arith.constant 0 : index
    %c0_4 = arith.constant 0 : index
    %3 = vector.load %arg9[%c0_3, %c0_4] : memref<72x22xbf16, #tpu.memory_space<vmem>>, vector<8x22xbf16>
    tpu.vector_store %arg9[%c0_3, %c0_4], %2 {strides = array<i32>} : memref<72x22xbf16, #tpu.memory_space<vmem>>, vector<8x22xbf16>,
    %4 = vector.extract_strided_slice %1 {offsets = [0, 1], sizes = [8, 22], strides = [1, 1]} : vector<8x36xbf16> to vector<8x22xbf16>
    %c8 = arith.constant 8 : index
    %c0_5 = arith.constant 0 : index
    %5 = vector.load %arg9[%c8, %c0_5] : memref<72x22xbf16, #tpu.memory_space<vmem>>, vector<8x22xbf16>
    tpu.vector_store %arg9[%c8, %c0_5], %4 {strides = array<i32>} : memref<72x22xbf16, #tpu.memory_space<vmem>>, vector<8x22xbf16>,
    %6 = vector.extract_strided_slice %1 {offsets = [0, 2], sizes = [8, 22], strides = [1, 1]} : vector<8x36xbf16> to vector<8x22xbf16>
    %c16 = arith.constant 16 : index
    %c0_6 = arith.constant 0 : index
    %7 = vector.load %arg9[%c16, %c0_6] : memref<72x22xbf16, #tpu.memory_space<vmem>>, vector<8x22xbf16>
    tpu.vector_store %arg9[%c16, %c0_6], %6 {strides = array<i32>} : memref<72x22xbf16, #tpu.memory_space<vmem>>, vector<8x22xbf16>,
    %8 = vector.extract_strided_slice %1 {offsets = [0, 6], sizes = [8, 22], strides = [1, 1]} : vector<8x36xbf16> to vector<8x22xbf16>
    %c24 = arith.constant 24 : index
    %c0_7 = arith.constant 0 : index
    %9 = vector.load %arg9[%c24, %c0_7] : memref<72x22xbf16, #tpu.memory_space<vmem>>, vector<8x22xbf16>
    tpu.vector_store %arg9[%c24, %c0_7], %8 {strides = array<i32>} : memref<72x22xbf16, #tpu.memory_space<vmem>>, vector<8x22xbf16>,
    %10 = vector.extract_strided_slice %1 {offsets = [0, 7], sizes = [8, 22], strides = [1, 1]} : vector<8x36xbf16> to vector<8x22xbf16>
    %c32 = arith.constant 32 : index
    %c0_8 = arith.constant 0 : index
    %11 = vector.load %arg9[%c32, %c0_8] : memref<72x22xbf16, #tpu.memory_space<vmem>>, vector<8x22xbf16>
    tpu.vector_store %arg9[%c32, %c0_8], %10 {strides = array<i32>} : memref<72x22xbf16, #tpu.memory_space<vmem>>, vector<8x22xbf16>,
    %12 = vector.extract_strided_slice %1 {offsets = [0, 8], sizes = [8, 22], strides = [1, 1]} : vector<8x36xbf16> to vector<8x22xbf16>
    %c40 = arith.constant 40 : index
    %c0_9 = arith.constant 0 : index
    %13 = vector.load %arg9[%c40, %c0_9] : memref<72x22xbf16, #tpu.memory_space<vmem>>, vector<8x22xbf16>
    tpu.vector_store %arg9[%c40, %c0_9], %12 {strides = array<i32>} : memref<72x22xbf16, #tpu.memory_space<vmem>>, vector<8x22xbf16>,
    %14 = vector.extract_strided_slice %1 {offsets = [0, 12], sizes = [8, 22], strides = [1, 1]} : vector<8x36xbf16> to vector<8x22xbf16>
    %c48 = arith.constant 48 : index
    %c0_10 = arith.constant 0 : index
    %15 = vector.load %arg9[%c48, %c0_10] : memref<72x22xbf16, #tpu.memory_space<vmem>>, vector<8x22xbf16>
    tpu.vector_store %arg9[%c48, %c0_10], %14 {strides = array<i32>} : memref<72x22xbf16, #tpu.memory_space<vmem>>, vector<8x22xbf16>,
    %16 = vector.extract_strided_slice %1 {offsets = [0, 13], sizes = [8, 22], strides = [1, 1]} : vector<8x36xbf16> to vector<8x22xbf16>
    %c56 = arith.constant 56 : index
    %c0_11 = arith.constant 0 : index
    %17 = vector.load %arg9[%c56, %c0_11] : memref<72x22xbf16, #tpu.memory_space<vmem>>, vector<8x22xbf16>
    tpu.vector_store %arg9[%c56, %c0_11], %16 {strides = array<i32>} : memref<72x22xbf16, #tpu.memory_space<vmem>>, vector<8x22xbf16>,
    %18 = vector.extract_strided_slice %1 {offsets = [0, 14], sizes = [8, 22], strides = [1, 1]} : vector<8x36xbf16> to vector<8x22xbf16>
    %c64 = arith.constant 64 : index
    %c0_12 = arith.constant 0 : index
    %19 = vector.load %arg9[%c64, %c0_12] : memref<72x22xbf16, #tpu.memory_space<vmem>>, vector<8x22xbf16>
    tpu.vector_store %arg9[%c64, %c0_12], %18 {strides = array<i32>} : memref<72x22xbf16, #tpu.memory_space<vmem>>, vector<8x22xbf16>,
    %20 = arith.index_cast %arg2 : i32 to index
    %c0_13 = arith.constant 0 : index
    %c0_14 = arith.constant 0 : index
    %21 = vector.load %arg4[%20, %c0_13, %c0_14] : memref<3x16x72xbf16, #tpu.memory_space<vmem>>, vector<1x16x72xbf16>
    %22 = vector.shape_cast %21 : vector<1x16x72xbf16> to vector<16x72xbf16>
    %c0_15 = arith.constant 0 : index
    %c0_16 = arith.constant 0 : index
    %23 = vector.load %arg9[%c0_15, %c0_16] : memref<72x22xbf16, #tpu.memory_space<vmem>>, vector<72x22xbf16>
    %cst = arith.constant dense<0.000000e+00> : vector<16x22xf32>
    %24 = tpu.matmul %22, %23, %cst {dimension_numbers = #tpu.dot_dimension_numbers<[1], [0], [0], [1], [0, 0, 1, 1], [], []>} : vector<16x72xbf16>, vector<72x22xbf16>, vector<16x22xf32> -> vector<16x22xf32>
    %c0_i32 = arith.constant 0 : i32
    %25 = arith.cmpi eq, %arg2, %c0_i32 : i32
    %26 = arith.extui %25 : i1 to i32
    %c0_i32_17 = arith.constant 0 : i32
    %27 = arith.cmpi ne, %26, %c0_i32_17 : i32
    scf.if %27 {
      %c0_21 = arith.constant 0 : index
      %c0_22 = arith.constant 0 : index
      %34 = vector.load %arg8[%c0_21, %c0_22] : memref<16x22xf32, #tpu.memory_space<vmem>>, vector<16x22xf32>
      tpu.vector_store %arg8[%c0_21, %c0_22], %24 {strides = array<i32>} : memref<16x22xf32, #tpu.memory_space<vmem>>, vector<16x22xf32>,
    } else {
    }
    %c0_i32_18 = arith.constant 0 : i32
    %28 = arith.cmpi ne, %arg2, %c0_i32_18 : i32
    %29 = arith.extui %28 : i1 to i32
    %c0_i32_19 = arith.constant 0 : i32
    %30 = arith.cmpi ne, %29, %c0_i32_19 : i32
    scf.if %30 {
      %c0_21 = arith.constant 0 : index
      %c0_22 = arith.constant 0 : index
      %34 = vector.load %arg8[%c0_21, %c0_22] : memref<16x22xf32, #tpu.memory_space<vmem>>, vector<16x22xf32>
      %35 = arith.addf %34, %24 : vector<16x22xf32>
      %c0_23 = arith.constant 0 : index
      %c0_24 = arith.constant 0 : index
      %36 = vector.load %arg8[%c0_23, %c0_24] : memref<16x22xf32, #tpu.memory_space<vmem>>, vector<16x22xf32>
      tpu.vector_store %arg8[%c0_23, %c0_24], %35 {strides = array<i32>} : memref<16x22xf32, #tpu.memory_space<vmem>>, vector<16x22xf32>,
    } else {
    }
    %c2_i32 = arith.constant 2 : i32
    %31 = arith.cmpi eq, %arg2, %c2_i32 : i32
    %32 = arith.extui %31 : i1 to i32
    %c0_i32_20 = arith.constant 0 : i32
    %33 = arith.cmpi ne, %32, %c0_i32_20 : i32
    scf.if %33 {
      %c0_21 = arith.constant 0 : index
      %c0_22 = arith.constant 0 : index
      %34 = vector.load %arg8[%c0_21, %c0_22] : memref<16x22xf32, #tpu.memory_space<vmem>>, vector<16x22xf32>
      %c0_23 = arith.constant 0 : index
      %c0_24 = arith.constant 0 : index
      %35 = vector.load %arg5[%c0_23, %c0_24] : memref<16x1xf32, #tpu.memory_space<vmem>>, vector<16x1xf32>
      %36 = vector.broadcast %35 : vector<16x1xf32> to vector<16x22xf32>
      %37 = arith.addf %34, %36 : vector<16x22xf32>
      %cst_25 = arith.constant 0.000000e+00 : f32
      %38 = vector.broadcast %cst_25 : f32 to vector<16x22xf32>
      %39 = arith.cmpf ogt, %37, %38 : vector<16x22xf32>
      %cst_26 = arith.constant 0.00999999977 : f32
      %40 = vector.broadcast %cst_26 : f32 to vector<16x22xf32>
      %41 = arith.mulf %40, %37 : vector<16x22xf32>
      %42 = arith.select %39, %37, %41 : vector<16x22xi1>, vector<16x22xf32>
      %c0_27 = arith.constant 0 : index
      %c0_28 = arith.constant 0 : index
      %43 = vector.load %arg6[%c0_27, %c0_28] : memref<1x22xf32, #tpu.memory_space<vmem>>, vector<1x22xf32>
      %44 = vector.broadcast %43 : vector<1x22xf32> to vector<16x22xf32>
      %45 = arith.mulf %42, %44 : vector<16x22xf32>
      %46 = arith.truncf %45 : vector<16x22xf32> to vector<16x22xbf16>
      %c0_29 = arith.constant 0 : index
      %c0_30 = arith.constant 0 : index
      %c0_31 = arith.constant 0 : index
      %c0_32 = arith.constant 0 : index
      %47 = vector.load %arg7[%c0_29, %c0_30, %c0_31, %c0_32] : memref<1x1x16x22xbf16, #tpu.memory_space<vmem>>, vector<1x1x16x22xbf16>
      %48 = vector.shape_cast %47 : vector<1x1x16x22xbf16> to vector<16x22xbf16>
      %49 = vector.shape_cast %46 : vector<16x22xbf16> to vector<1x1x16x22xbf16>
      tpu.vector_store %arg7[%c0_29, %c0_30, %c0_31, %c0_32], %49 {strides = array<i32>} : memref<1x1x16x22xbf16, #tpu.memory_space<vmem>>, vector<1x1x16x22xbf16>,
    } else {
    }
    return
  }
  func.func @transform_0(%arg0: i32, %arg1: i32, %arg2: i32) -> (i32, i32, i32, i32) {
    %0 = arith.addi %arg1, %arg2 : i32
    %c0_i32 = arith.constant 0 : i32
    %c0_i32_0 = arith.constant 0 : i32
    %c0_i32_1 = arith.constant 0 : i32
    return %arg0, %0, %c0_i32, %c0_i32_0 : i32, i32, i32, i32
  }
  func.func @transform_1(%arg0: i32, %arg1: i32, %arg2: i32) -> (i32, i32, i32) {
    %c0_i32 = arith.constant 0 : i32
    %c0_i32_0 = arith.constant 0 : i32
    %c0_i32_1 = arith.constant 0 : i32
    %c0_i32_2 = arith.constant 0 : i32
    return %c0_i32, %c0_i32_0, %c0_i32_1 : i32, i32, i32
  }
  func.func @transform_2(%arg0: i32, %arg1: i32, %arg2: i32) -> (i32, i32) {
    %c0_i32 = arith.constant 0 : i32
    %c0_i32_0 = arith.constant 0 : i32
    %c0_i32_1 = arith.constant 0 : i32
    return %c0_i32, %c0_i32_0 : i32, i32
  }
  func.func @transform_3(%arg0: i32, %arg1: i32, %arg2: i32) -> (i32, i32) {
    %c0_i32 = arith.constant 0 : i32
    %c0_i32_0 = arith.constant 0 : i32
    %c0_i32_1 = arith.constant 0 : i32
    return %c0_i32, %c0_i32_0 : i32, i32
  }
  func.func @transform_4(%arg0: i32, %arg1: i32, %arg2: i32) -> (i32, i32, i32, i32) {
    %c0_i32 = arith.constant 0 : i32
    %c0_i32_0 = arith.constant 0 : i32
    %c0_i32_1 = arith.constant 0 : i32
    return %arg0, %arg1, %c0_i32, %c0_i32_0 : i32, i32, i32, i32
  }
}

module attributes {stable_mosaic.version = 11 : i64} {
  func.func @_head_kernel(%arg0: i32, %arg1: memref<2x128xbf16, #tpu.memory_space<vmem>>, %arg2: memref<128x64xbf16, #tpu.memory_space<vmem>>, %arg3: memref<1x64xf32, #tpu.memory_space<vmem>>, %arg4: memref<64x1xf32, #tpu.memory_space<vmem>>, %arg5: memref<1x1xf32, #tpu.memory_space<vmem>>, %arg6: memref<2x1xf32, #tpu.memory_space<vmem>>, %arg7: memref<2x64xf32, #tpu.memory_space<vmem>>) attributes {dimension_semantics = [#tpu.dimension_semantics<arbitrary>], iteration_bounds = array<i64: 1>, scalar_prefetch = 0 : i64, scratch_operands = 1 : i64, tpu.core_type = #tpu.core_type<tc>, window_params = [{transform_indices = @transform_0, window_bounds = array<i64: 2, 128>}, {transform_indices = @transform_1, window_bounds = array<i64: 128, 64>}, {pipeline_mode = #tpu.pipeline_mode<synchronous>, transform_indices = @transform_2, window_bounds = array<i64: 1, 64>}, {pipeline_mode = #tpu.pipeline_mode<synchronous>, transform_indices = @transform_3, window_bounds = array<i64: 64, 1>}, {pipeline_mode = #tpu.pipeline_mode<synchronous>, transform_indices = @transform_4, window_bounds = array<i64: 1, 1>}, {pipeline_mode = #tpu.pipeline_mode<synchronous>, transform_indices = @transform_5, window_bounds = array<i64: 2, 1>}]} {
    %c0 = arith.constant 0 : index
    %c0_0 = arith.constant 0 : index
    %0 = vector.load %arg1[%c0, %c0_0] : memref<2x128xbf16, #tpu.memory_space<vmem>>, vector<2x128xbf16>
    %c0_1 = arith.constant 0 : index
    %c0_2 = arith.constant 0 : index
    %1 = vector.load %arg2[%c0_1, %c0_2] : memref<128x64xbf16, #tpu.memory_space<vmem>>, vector<128x64xbf16>
    %cst = arith.constant dense<0.000000e+00> : vector<2x64xf32>
    %2 = tpu.matmul %0, %1, %cst {dimension_numbers = #tpu.dot_dimension_numbers<[1], [0], [0], [1], [0, 0, 1, 1], [], []>} : vector<2x128xbf16>, vector<128x64xbf16>, vector<2x64xf32> -> vector<2x64xf32>
    %c0_i32 = arith.constant 0 : i32
    %3 = arith.cmpi eq, %arg0, %c0_i32 : i32
    %4 = arith.extui %3 : i1 to i32
    %c0_i32_3 = arith.constant 0 : i32
    %5 = arith.cmpi ne, %4, %c0_i32_3 : i32
    scf.if %5 {
      %c0_8 = arith.constant 0 : index
      %c0_9 = arith.constant 0 : index
      %12 = vector.load %arg7[%c0_8, %c0_9] : memref<2x64xf32, #tpu.memory_space<vmem>>, vector<2x64xf32>
      tpu.vector_store %arg7[%c0_8, %c0_9], %2 {strides = array<i32>} : memref<2x64xf32, #tpu.memory_space<vmem>>, vector<2x64xf32>,
    } else {
    }
    %c0_i32_4 = arith.constant 0 : i32
    %6 = arith.cmpi ne, %arg0, %c0_i32_4 : i32
    %7 = arith.extui %6 : i1 to i32
    %c0_i32_5 = arith.constant 0 : i32
    %8 = arith.cmpi ne, %7, %c0_i32_5 : i32
    scf.if %8 {
      %c0_8 = arith.constant 0 : index
      %c0_9 = arith.constant 0 : index
      %12 = vector.load %arg7[%c0_8, %c0_9] : memref<2x64xf32, #tpu.memory_space<vmem>>, vector<2x64xf32>
      %13 = arith.addf %12, %2 : vector<2x64xf32>
      %c0_10 = arith.constant 0 : index
      %c0_11 = arith.constant 0 : index
      %14 = vector.load %arg7[%c0_10, %c0_11] : memref<2x64xf32, #tpu.memory_space<vmem>>, vector<2x64xf32>
      tpu.vector_store %arg7[%c0_10, %c0_11], %13 {strides = array<i32>} : memref<2x64xf32, #tpu.memory_space<vmem>>, vector<2x64xf32>,
    } else {
    }
    %c0_i32_6 = arith.constant 0 : i32
    %9 = arith.cmpi eq, %arg0, %c0_i32_6 : i32
    %10 = arith.extui %9 : i1 to i32
    %c0_i32_7 = arith.constant 0 : i32
    %11 = arith.cmpi ne, %10, %c0_i32_7 : i32
    scf.if %11 {
      %c0_8 = arith.constant 0 : index
      %c0_9 = arith.constant 0 : index
      %12 = vector.load %arg7[%c0_8, %c0_9] : memref<2x64xf32, #tpu.memory_space<vmem>>, vector<2x64xf32>
      %c0_10 = arith.constant 0 : index
      %c0_11 = arith.constant 0 : index
      %13 = vector.load %arg3[%c0_10, %c0_11] : memref<1x64xf32, #tpu.memory_space<vmem>>, vector<1x64xf32>
      %14 = vector.broadcast %13 : vector<1x64xf32> to vector<2x64xf32>
      %15 = arith.addf %12, %14 : vector<2x64xf32>
      %cst_12 = arith.constant 0.000000e+00 : f32
      %16 = vector.broadcast %cst_12 : f32 to vector<2x64xf32>
      %17 = arith.cmpf ogt, %15, %16 : vector<2x64xf32>
      %cst_13 = arith.constant 0.00999999977 : f32
      %18 = vector.broadcast %cst_13 : f32 to vector<2x64xf32>
      %19 = arith.mulf %18, %15 : vector<2x64xf32>
      %20 = arith.select %17, %15, %19 : vector<2x64xi1>, vector<2x64xf32>
      %c0_14 = arith.constant 0 : index
      %c0_15 = arith.constant 0 : index
      %21 = vector.load %arg4[%c0_14, %c0_15] : memref<64x1xf32, #tpu.memory_space<vmem>>, vector<64x1xf32>
      %cst_16 = arith.constant dense<0.000000e+00> : vector<2x1xf32>
      %22 = tpu.matmul %20, %21, %cst_16 {dimension_numbers = #tpu.dot_dimension_numbers<[1], [0], [0], [1], [0, 0, 1, 1], [], []>} : vector<2x64xf32>, vector<64x1xf32>, vector<2x1xf32> -> vector<2x1xf32>
      %c0_17 = arith.constant 0 : index
      %c0_18 = arith.constant 0 : index
      %23 = vector.load %arg5[%c0_17, %c0_18] : memref<1x1xf32, #tpu.memory_space<vmem>>, vector<1x1xf32>
      %24 = vector.broadcast %23 : vector<1x1xf32> to vector<2x1xf32>
      %25 = arith.addf %22, %24 : vector<2x1xf32>
      %26 = math.absf %25 : vector<2x1xf32>
      %cst_19 = arith.constant 0.000000e+00 : f32
      %27 = vector.broadcast %cst_19 : f32 to vector<2x1xf32>
      %28 = arith.subf %27, %26 : vector<2x1xf32>
      %29 = math.exp %28 : vector<2x1xf32>
      %cst_20 = arith.constant 0.000000e+00 : f32
      %30 = vector.broadcast %cst_20 : f32 to vector<2x1xf32>
      %31 = arith.cmpf oge, %25, %30 : vector<2x1xf32>
      %cst_21 = arith.constant 1.000000e+00 : f32
      %32 = vector.broadcast %cst_21 : f32 to vector<2x1xf32>
      %33 = arith.addf %32, %29 : vector<2x1xf32>
      %cst_22 = arith.constant 1.000000e+00 : f32
      %34 = vector.broadcast %cst_22 : f32 to vector<2x1xf32>
      %35 = arith.divf %34, %33 : vector<2x1xf32>
      %cst_23 = arith.constant 1.000000e+00 : f32
      %36 = vector.broadcast %cst_23 : f32 to vector<2x1xf32>
      %37 = arith.addf %36, %29 : vector<2x1xf32>
      %38 = arith.divf %29, %37 : vector<2x1xf32>
      %39 = arith.select %31, %35, %38 : vector<2x1xi1>, vector<2x1xf32>
      %c0_24 = arith.constant 0 : index
      %c0_25 = arith.constant 0 : index
      %40 = vector.load %arg6[%c0_24, %c0_25] : memref<2x1xf32, #tpu.memory_space<vmem>>, vector<2x1xf32>
      tpu.vector_store %arg6[%c0_24, %c0_25], %39 {strides = array<i32>} : memref<2x1xf32, #tpu.memory_space<vmem>>, vector<2x1xf32>,
    } else {
    }
    return
  }
  func.func @transform_0(%arg0: i32) -> (i32, i32) {
    %c0_i32 = arith.constant 0 : i32
    %c0_i32_0 = arith.constant 0 : i32
    return %c0_i32, %arg0 : i32, i32
  }
  func.func @transform_1(%arg0: i32) -> (i32, i32) {
    %c0_i32 = arith.constant 0 : i32
    %c0_i32_0 = arith.constant 0 : i32
    return %arg0, %c0_i32 : i32, i32
  }
  func.func @transform_2(%arg0: i32) -> (i32, i32) {
    %c0_i32 = arith.constant 0 : i32
    %c0_i32_0 = arith.constant 0 : i32
    %c0_i32_1 = arith.constant 0 : i32
    return %c0_i32, %c0_i32_0 : i32, i32
  }
  func.func @transform_3(%arg0: i32) -> (i32, i32) {
    %c0_i32 = arith.constant 0 : i32
    %c0_i32_0 = arith.constant 0 : i32
    %c0_i32_1 = arith.constant 0 : i32
    return %c0_i32, %c0_i32_0 : i32, i32
  }
  func.func @transform_4(%arg0: i32) -> (i32, i32) {
    %c0_i32 = arith.constant 0 : i32
    %c0_i32_0 = arith.constant 0 : i32
    %c0_i32_1 = arith.constant 0 : i32
    return %c0_i32, %c0_i32_0 : i32, i32
  }
  func.func @transform_5(%arg0: i32) -> (i32, i32) {
    %c0_i32 = arith.constant 0 : i32
    %c0_i32_0 = arith.constant 0 : i32
    %c0_i32_1 = arith.constant 0 : i32
    return %c0_i32, %c0_i32_0 : i32, i32
  }
}

</mosaic_0001>

<llo_original>
// kernel: cnn_pre_forward.6
$region0: #{cnn_pre_forward.6}
  #allocation0 [shape = 'u32[]', space=smem, size = 0x4, offset = 0x4, fixed_abs, tag = 'smem constant byte address 0x4 - core index']
  #allocation1 [shape = 'u32[144,128]{1,0:T(1,128)}', space=vmem, size = 0x12000, scoped, tag = 'internal scratch']
  %s0 = inlined_call_operand.vmem [shape: bf16[2,12,8,166], index: 0, kind: input, shape index: {}]
  %s1 = inlined_call_operand.vmem [shape: bf16[151,36], index: 1, kind: input, shape index: {}]
  %s2 = inlined_call_operand.vmem [shape: bf16[2,6,8,36], index: 2, kind: output, shape index: {}]
  %s3 = sld [smem:[#allocation0]]
  $region41: #{cnn_pre_forward.6} parent=0
    _
  %s5 = ssub.s32 1, %s3
  %s6 = scalar_select 0, %s5, %s3
  loop: start=0, step=1, limit=14
  $region2: #{cnn_pre_forward.6} parent=0 // loop_pre_header
    _
  $region3: #{cnn_pre_forward.6} parent=0 // loop_header
    %s8 = sphi 0, %s12
    %p9 = scmp.ge.s32.totalorder %s8, 14
    %s15 = sphi 0, %s27
    %s16 = sphi 0, %s23
    %s17 = sphi 0, %s15
    %s18 = sphi 0, %s16
    %s19 = sphi 0, %s17
    %s20 = sphi 0, %s18
    %s32 = sphi 0, %s34
    %s35 = sphi 0, %s32
    %s36 = sphi 0, %s35
    %s52 = sphi 0, %s36
    %s56 = sphi 0, %s56
    %s58 = sphi 0, %s56
    %s59 = sphi 0, %s58
    %s73 = sphi 0, %s59
    %s81 = sphi 0, %s83
    %s84 = sphi 0, %s81
    %s85 = sphi 0, %s84
    %s101 = sphi 0, %s85
  $region4: #{cnn_pre_forward.6} parent=0 // loop_header_branch
    %11 = sbr.rel (%p9) target = $region8
  $region5: #{cnn_pre_forward.6} parent=0 // loop_body
    %s13 = ssub.s32 %s8, 1
    %s14 = ssub.s32 %s8, 2
    %s21 = sadd.s32 1, %s16
    %p22 = scmp.ge.s32.totalorder %s21, 6
    %s23 = scalar_select %p22, 0, %s21
    %s24 = sadd.s32 1, %s15
    %s25 = scalar_select %p22, %s24, %s15
    %p26 = scmp.ge.s32.totalorder %s25, 2
    %s27 = scalar_select %p26, 0, %s25
    %s28 = ssub.s32 %s15, %s27
    %s29 = ssub.s32 %s16, %s23
    %s30 = sor.u32 %s28, %s29
    %p31 = scmp.eq.s32.totalorder %s30, 0
    %s33 = sadd.s32 %s32, 1
    %s34 = scalar_select %p31, %s32, %s33
    %p37 = pneg %p31
    %p38 = scmp.eq.s32.totalorder %s8, 11
    %p39 = por %p37, %p38
    %p40 = scmp.ne.s32.totalorder %s32, %s35
    %p41 = scmp.eq.s32.totalorder %s8, 0
    %p42 = por %p40, %p41
    %p43 = scmp.ne.s32.totalorder %s32, %s35
    %p44 = scmp.eq.s32.totalorder %s13, 11
    %p45 = por %p43, %p44
    %p46 = scmp.ne.s32.totalorder %s35, %s36
    %p47 = scmp.eq.s32.totalorder %s13, 0
    %p48 = por %p46, %p47
    %p49 = scmp.ne.s32.totalorder %s35, %s36
    %p50 = scmp.eq.s32.totalorder %s14, 11
    %p51 = por %p49, %p50
    %p53 = scmp.ne.s32.totalorder %s36, %s52
    %p54 = scmp.eq.s32.totalorder %s14, 0
    %p55 = por %p53, %p54
    %s57 = sadd.s32 %s56, 1
    %p60 = scmp.eq.s32.totalorder %s8, 11
    %p61 = scmp.ne.s32.totalorder %s56, %s58
    %p62 = scmp.eq.s32.totalorder %s8, 0
    %p63 = por %p61, %p62
    %p64 = scmp.ne.s32.totalorder %s56, %s58
    %p65 = scmp.eq.s32.totalorder %s13, 11
    %p66 = por %p64, %p65
    %p67 = scmp.ne.s32.totalorder %s58, %s59
    %p68 = scmp.eq.s32.totalorder %s13, 0
    %p69 = por %p67, %p68
    %p70 = scmp.ne.s32.totalorder %s58, %s59
    %p71 = scmp.eq.s32.totalorder %s14, 11
    %p72 = por %p70, %p71
    %p74 = scmp.ne.s32.totalorder %s59, %s73
    %p75 = scmp.eq.s32.totalorder %s14, 0
    %p76 = por %p74, %p75
    %s77 = ssub.s32 %s15, %s27
    %s78 = ssub.s32 %s16, %s23
    %s79 = sor.u32 %s77, %s78
    %p80 = scmp.eq.s32.totalorder %s79, 0
    %s82 = sadd.s32 %s81, 1
    %s83 = scalar_select %p80, %s81, %s82
    %p86 = pneg %p80
    %p87 = scmp.eq.s32.totalorder %s8, 11
    %p88 = por %p86, %p87
    %p89 = scmp.ne.s32.totalorder %s81, %s84
    %p90 = scmp.eq.s32.totalorder %s8, 0
    %p91 = por %p89, %p90
    %p92 = scmp.ne.s32.totalorder %s81, %s84
    %p93 = scmp.eq.s32.totalorder %s13, 11
    %p94 = por %p92, %p93
    %p95 = scmp.ne.s32.totalorder %s84, %s85
    %p96 = scmp.eq.s32.totalorder %s13, 0
    %p97 = por %p95, %p96
    %p98 = scmp.ne.s32.totalorder %s84, %s85
    %p99 = scmp.eq.s32.totalorder %s14, 11
    %p100 = por %p98, %p99
    %p102 = scmp.ne.s32.totalorder %s85, %s101
    %p103 = scmp.eq.s32.totalorder %s14, 0
    %p104 = por %p102, %p103
    %p105 = scmp.le.s32.totalorder 1, %s8
    %p106 = scmp.lt.s32.totalorder %s8, 13
    %p107 = pnand %p105, %p106
    %p108 = pneg %p107
    // Predicated region
    $region9: #{cnn_pre_forward.6} parent=5 // pred_check
      _
    $region10: #{cnn_pre_forward.6} parent=5 // pred_check_branch
      %110 = sbr.rel (%p107) target = $region12
    $region11: #{cnn_pre_forward.6} parent=5 // pred_region
      %s111 = ssub.s32 %s8, 1
      // Predicated region
      $region13: #{cnn_pre_forward.6} parent=11 // pred_check
        %p112 = pneg %p69
      $region14: #{cnn_pre_forward.6} parent=11 // pred_check_branch
        %114 = sbr.rel (%p112) target = $region16
      $region15: #{cnn_pre_forward.6} parent=11 // pred_region
        _
      $region16: #{cnn_pre_forward.6} parent=11 // pred_fallthru
        _
    $region12: #{cnn_pre_forward.6} parent=5 // pred_fallthru
      _
    %p115 = scmp.lt.s32.totalorder %s8, 12
    // Predicated region
    $region17: #{cnn_pre_forward.6} parent=5 // pred_check
      %p116 = pneg %p115
    $region18: #{cnn_pre_forward.6} parent=5 // pred_check_branch
      %118 = sbr.rel (%p116) target = $region20
    $region19: #{cnn_pre_forward.6} parent=5 // pred_region
      // Predicated region
      $region21: #{cnn_pre_forward.6} parent=19 // pred_check
        %p119 = pneg %p42
      $region22: #{cnn_pre_forward.6} parent=19 // pred_check_branch
        %121 = sbr.rel (%p119) target = $region24
      $region23: #{cnn_pre_forward.6} parent=19 // pred_region
        %s122 = smul.u32 2, %s16
        %p123 = scmp.lt.s32.totalorder %s15, 1
        %s124 = scalar_select %p123, %s15, 1
        %p125 = scmp.lt.s32.totalorder %s122, 11
        %s126 = scalar_select %p125, %s122, 11
        %s127 = smul.addr %s126, 2
        %s128 = smul.addr %s124, 24
        %s129 = sadd.s32 %s127, %s128
        %s130 = smul.addr %s129, 4
        %s131 = scalar_lea.vmem %s0, %s130
        %s132 = smul.u32 2, %s16
      $region24: #{cnn_pre_forward.6} parent=19 // pred_fallthru
        _
    $region20: #{cnn_pre_forward.6} parent=5 // pred_fallthru
      _
    %p133 = scmp.le.s32.totalorder 1, %s8
    %p134 = scmp.lt.s32.totalorder %s8, 13
    %p135 = pnand %p133, %p134
    %p136 = pneg %p135
    // Predicated region
    $region25: #{cnn_pre_forward.6} parent=5 // pred_check
      _
    $region26: #{cnn_pre_forward.6} parent=5 // pred_check_branch
      %138 = sbr.rel (%p135) target = $region28
    $region27: #{cnn_pre_forward.6} parent=5 // pred_region
      %s139 = ssub.s32 %s8, 1
      %s140 = smul.u32 2, %s18
      %p141 = scmp.lt.s32.totalorder %s17, 1
      %s142 = scalar_select %p141, %s17, 1
      %p143 = scmp.lt.s32.totalorder %s140, 11
      %s144 = scalar_select %p143, %s140, 11
      %s145 = smul.addr %s144, 2
      %s146 = smul.addr %s142, 24
      %s147 = sadd.s32 %s145, %s146
      %s148 = smul.addr %s147, 4
      %s149 = scalar_lea.vmem %s0, %s148
      %p150 = pneg %p48
      %p151 = pneg %p45
      %p152 = pneg %p69
      %p153 = pneg %p66
      %p154 = pneg %p97
      %p155 = pneg %p94
      %p156 = scmp.lt.s32.totalorder %s17, 1
      %s157 = scalar_select %p156, %s17, 1
      %p158 = scmp.lt.s32.totalorder %s18, 5
      %s159 = scalar_select %p158, %s18, 5
      %s160 = smul.addr %s157, 6
      %s161 = sadd.s32 %s159, %s160
      %s162 = smul.addr %s161, 4
      %s163 = scalar_lea.vmem %s2, %s162
      %s164 = smul.u32 2, %s18
      %p165 = scmp.lt.s32.totalorder %s17, 1
      %s166 = scalar_select %p165, %s17, 1
      %p167 = scmp.lt.s32.totalorder %s164, 11
      %s168 = scalar_select %p167, %s164, 11
      %s169 = smul.addr %s168, 2
      %s170 = smul.addr %s166, 24
      %s171 = sadd.s32 %s169, %s170
      %s172 = smul.addr %s171, 4
      %s173 = scalar_lea.vmem %s0, %s172
      %s174 = smul.u32 2, %s18
      %p175 = scmp.lt.s32.totalorder %s17, 1
      %s176 = scalar_select %p175, %s17, 1
      %p177 = scmp.lt.s32.totalorder %s18, 5
      %s178 = scalar_select %p177, %s18, 5
      %s179 = smul.addr %s176, 6
      %s180 = sadd.s32 %s178, %s179
      %s181 = smul.addr %s180, 4
      %s182 = scalar_lea.vmem %s2, %s181
      %v184 = vld [vmem:[%s173] sm:$0xff]
      %s185 = scalar_lea.vmem %s173, 8
      %v186 = vld [vmem:[%s185] sm:$0xff]
      %v187 = vmax.bf16 %v184, %v186
      %189 = vrot.lane.b32.xlu0 %v187, 127
      %v190 = vpop.permute.xlu0 %189
      %v191 = vrot.slane %v190, 4
      %vm192 = vcmask 1039360
      %v193 = vsel %vm192, %v190, %v191
      %v195 = vmax.bf16 %v187, %v193
      %197 = vrot.lane.b32.xlu0 %v195, 114
      %v198 = vpop.permute.xlu0 %197
      %v199 = vrot.slane %v198, 4
      %vm200 = vcmask 932864
      %v201 = vsel %vm200, %v198, %v199
      %v203 = vmax.bf16 %v195, %v201
      %v204 = vld [vmem:[%s1] sm:$0xf]
      %v205 = vld [vmem:[%s1 + $0x4] sm:$0xf]
      %v206 = vld [vmem:[%s1 + $0x8] sm:$0xf]
      %v207 = vld [vmem:[%s1 + $0xc] sm:$0xf]
      %v208 = vld [vmem:[%s1 + $0x10] sm:$0xf]
      %v209 = vld [vmem:[%s1 + $0x14] sm:$0xf]
      %v210 = vld [vmem:[%s1 + $0x18] sm:$0xf]
      %v211 = vld [vmem:[%s1 + $0x1c] sm:$0xf]
      %v212 = vld [vmem:[%s1 + $0x20] sm:$0xf]
      %v213 = vld [vmem:[%s1 + $0x24] sm:$0xf]
      %v214 = vld [vmem:[%s1 + $0x28] sm:$0xf]
      %v215 = vld [vmem:[%s1 + $0x2c] sm:$0xf]
      %v216 = vld [vmem:[%s1 + $0x30] sm:$0xf]
      %v217 = vld [vmem:[%s1 + $0x34] sm:$0xf]
      %v218 = vld [vmem:[%s1 + $0x38] sm:$0xf]
      %v219 = vld [vmem:[%s1 + $0x3c] sm:$0xf]
      %v220 = vld [vmem:[%s1 + $0x40] sm:$0xf]
      %v221 = vld [vmem:[%s1 + $0x44] sm:$0xf]
      %v222 = vld [vmem:[%s1 + $0x48] sm:$0xf]
      %v224 = vunpack.c.l.b16 %v203
      %v225 = vunpack.c.h.b16 %v203
      %v226 = vpack.c.b16 %v224, %v224
      %v227 = vpack.c.b16 %v225, %v225
      %v248 = vunpack.c.l.b16 %v204
      %v249 = vunpack.c.l.b16 %v205
      %v250 = vunpack.c.l.b16 %v206
      %v251 = vunpack.c.l.b16 %v207
      %v252 = vunpack.c.l.b16 %v208
      %v253 = vunpack.c.l.b16 %v209
      %v254 = vunpack.c.l.b16 %v210
      %v255 = vunpack.c.l.b16 %v211
      %v256 = vunpack.c.l.b16 %v212
      %v257 = vunpack.c.l.b16 %v213
      %v258 = vunpack.c.l.b16 %v214
      %v259 = vunpack.c.l.b16 %v215
      %v260 = vunpack.c.l.b16 %v216
      %v261 = vunpack.c.l.b16 %v217
      %v262 = vunpack.c.l.b16 %v218
      %v263 = vunpack.c.l.b16 %v219
      %v264 = vunpack.c.l.b16 %v220
      %v265 = vunpack.c.l.b16 %v221
      %v266 = vunpack.c.l.b16 %v222
      %v267 = vpack.c.b16 %v249, %v248
      %v268 = vpack.c.b16 %v251, %v250
      %v269 = vpack.c.b16 %v253, %v252
      %v270 = vpack.c.b16 %v255, %v254
      %v271 = vpack.c.b16 %v257, %v256
      %v272 = vpack.c.b16 %v259, %v258
      %v273 = vpack.c.b16 %v261, %v260
      %v274 = vpack.c.b16 %v263, %v262
      %v275 = vpack.c.b16 %v265, %v264
      %v276 = vpack.c.b16 %v266, %v266
      %vm286 = vcmask 187392
      %v288 = vsel %vm286, %v227, 0
      %vm290 = vcmask 1042432
      %vm291 = vcmask 1043456
      %v292 = vsel %vm290, 4294967295, 65535
      %v293 = vsel %vm291, %v292, 0
      %v295 = vand.u32 %v276, %v293
      %297 = vmatprep.subr.bf16.mxu0 0
      %298 = vmatpush1.bf16.msra.mxu0 %v267
      %299 = vmatprep.subr.bf16.mxu0 0
      %300 = vmatpush1.bf16.msra.mxu0 %v268
      %301 = vmatprep.subr.bf16.mxu0 0
      %302 = vmatpush1.bf16.msra.mxu0 %v269
      %303 = vmatprep.subr.bf16.mxu0 0
      %304 = vmatpush1.bf16.msra.mxu0 %v270
      %305 = vmatprep.subr.bf16.mxu0 0
      %306 = vmatpush1.bf16.msra.mxu0 %v271
      %307 = vmatprep.subr.bf16.mxu0 0
      %308 = vmatpush1.bf16.msra.mxu0 %v272
      %309 = vmatprep.subr.bf16.mxu0 0
      %310 = vmatpush1.bf16.msra.mxu0 %v273
      %311 = vmatprep.subr.bf16.mxu0 0
      %312 = vmatpush1.bf16.msra.mxu0 %v274
      %313 = vmatprep.subr.bf16.mxu0 0
      %314 = vmatpush1.bf16.msra.mxu0 %v275
      %315 = vmatprep.subr.bf16.mxu0 0
      %316 = vmatpush1.bf16.msra.mxu0 %v295
      %317 = vmatprep.subr.bf16.mxu0 0
      %318 = vmatpush1.bf16.msra.mxu0 0
      %319 = vmatprep.subr.bf16.mxu0 0
      %320 = vmatpush1.bf16.msra.mxu0 0
      %321 = vmatprep.subr.bf16.mxu0 0
      %322 = vmatpush1.bf16.msra.mxu0 0
      %323 = vmatprep.subr.bf16.mxu0 0
      %324 = vmatpush1.bf16.msra.mxu0 0
      %325 = vmatprep.subr.bf16.mxu0 0
      %326 = vmatpush1.bf16.msra.mxu0 0
      %327 = vmatprep.subr.bf16.mxu0 0
      %328 = vmatpush1.bf16.msra.mxu0 0
      %329 = vmatprep.mubr.bf16.mxu0 %v288
      %330 = vmatmul.mubr.bf16.gmra.mrb[0].mxu0 %v226
      %v331 = vpop.f32.mrb[0].mxu0
      %v332 = vadd.f32 0.0, %v331
      %v333 = vpop.f32.mrb[0].mxu0
      %v334 = vpop.f32.mrb[0].mxu0
      %v335 = vpop.f32.mrb[0].mxu0
      %336 = vdwg.mxu0
      %v337 = vpack.c.bf16 %v332, %v332
      %vm338 = vcmask 289792
      %339 = vst.msk [vmem:[%s182] sm:$0xf] %vm338, %v337
      %p340 = scmp.lt.s32.totalorder %s17, 1
      %s341 = scalar_select %p340, %s17, 1
      %p342 = scmp.lt.s32.totalorder %s18, 5
      %s343 = scalar_select %p342, %s18, 5
      %s344 = smul.addr %s341, 6
      %s345 = sadd.s32 %s343, %s344
      %s346 = smul.addr %s345, 4
      %s347 = scalar_lea.vmem %s2, %s346
      // Predicated region
      $region29: #{cnn_pre_forward.6} parent=27 // pred_check
        %p348 = pneg %p94
      $region30: #{cnn_pre_forward.6} parent=27 // pred_check_branch
        %350 = sbr.rel (%p348) target = $region32
      $region31: #{cnn_pre_forward.6} parent=27 // pred_region
        _
      $region32: #{cnn_pre_forward.6} parent=27 // pred_fallthru
        _
    $region28: #{cnn_pre_forward.6} parent=5 // pred_fallthru
      _
    %p351 = scmp.le.s32.totalorder 2, %s8
    // Predicated region
    $region33: #{cnn_pre_forward.6} parent=5 // pred_check
      %p352 = pneg %p351
    $region34: #{cnn_pre_forward.6} parent=5 // pred_check_branch
      %354 = sbr.rel (%p352) target = $region36
    $region35: #{cnn_pre_forward.6} parent=5 // pred_region
      %s355 = ssub.s32 %s8, 2
      // Predicated region
      $region37: #{cnn_pre_forward.6} parent=35 // pred_check
        %p356 = pneg %p100
      $region38: #{cnn_pre_forward.6} parent=35 // pred_check_branch
        %358 = sbr.rel (%p356) target = $region40
      $region39: #{cnn_pre_forward.6} parent=35 // pred_region
        %p359 = scmp.lt.s32.totalorder %s19, 1
        %s360 = scalar_select %p359, %s19, 1
        %p361 = scmp.lt.s32.totalorder %s20, 5
        %s362 = scalar_select %p361, %s20, 5
        %s363 = smul.addr %s360, 6
        %s364 = sadd.s32 %s362, %s363
        %s365 = smul.addr %s364, 4
        %s366 = scalar_lea.vmem %s2, %s365
      $region40: #{cnn_pre_forward.6} parent=35 // pred_fallthru
        _
    $region36: #{cnn_pre_forward.6} parent=5 // pred_fallthru
      _
  $region6: #{cnn_pre_forward.6} parent=0 // loop_footer
    %s12 = sadd.s32 1, %s8
  $region7: #{cnn_pre_forward.6} parent=0 // loop_footer_branch
    %7 = sbr.rel target = $region3
  $region8: #{cnn_pre_forward.6} parent=0 // loop_exit
    _

// kernel: cnn_pre_forward.5
$region0: #{cnn_pre_forward.5}
  #allocation0 [shape = 'u32[]', space=smem, size = 0x4, offset = 0x4, fixed_abs, tag = 'smem constant byte address 0x4 - core index']
  #allocation1 [shape = 'u32[144,128]{1,0:T(1,128)}', space=vmem, size = 0x12000, scoped, tag = 'internal scratch']
  #allocation2 [shape = 'f32[8,166]{1,0:T(8,128)}', space=vmem, size = 0x2000, scoped, tag = 'scratch operand']
  #allocation3 [shape = 'bf16[9,166]{1,0:T(8,128)(2,1)}', space=vmem, size = 0x2000, scoped, tag = 'scratch operand']
  %s0 = inlined_call_operand.vmem [shape: bf16[2,14,1,196], index: 0, kind: input, shape index: {}]
  %s1 = inlined_call_operand.vmem [shape: bf16[3,8,9], index: 1, kind: input, shape index: {}]
  %s2 = inlined_call_operand.vmem [shape: f32[8,1], index: 2, kind: input, shape index: {}]
  %s3 = inlined_call_operand.vmem [shape: f32[1,166], index: 3, kind: input, shape index: {}]
  %s4 = inlined_call_operand.vmem [shape: bf16[2,12,8,166], index: 4, kind: output, shape index: {}]
  %s5 = sld [smem:[#allocation0]]
  $region61: #{cnn_pre_forward.5} parent=0
    _
  %s7 = ssub.s32 1, %s5
  %s8 = scalar_select 0, %s7, %s5
  loop: start=0, step=1, limit=74
  $region2: #{cnn_pre_forward.5} parent=0 // loop_pre_header
    _
  $region3: #{cnn_pre_forward.5} parent=0 // loop_header
    %s10 = sphi 0, %s14
    %p11 = scmp.ge.s32.totalorder %s10, 74
    %s17 = sphi 0, %s36
    %s18 = sphi 0, %s32
    %s19 = sphi 0, %s28
    %s20 = sphi 0, %s17
    %s21 = sphi 0, %s18
    %s22 = sphi 0, %s19
    %s23 = sphi 0, %s20
    %s24 = sphi 0, %s21
    %s25 = sphi 0, %s22
    %s43 = sphi 0, %s45
    %s46 = sphi 0, %s43
    %s47 = sphi 0, %s46
    %s63 = sphi 0, %s47
    %s67 = sphi 0, %s67
    %s69 = sphi 0, %s67
    %s70 = sphi 0, %s69
    %s84 = sphi 0, %s70
    %s88 = sphi 0, %s88
    %s90 = sphi 0, %s88
    %s91 = sphi 0, %s90
    %s105 = sphi 0, %s91
    %s109 = sphi 0, %s109
    %s111 = sphi 0, %s109
    %s112 = sphi 0, %s111
    %s126 = sphi 0, %s112
    %s134 = sphi 0, %s136
    %s137 = sphi 0, %s134
    %s138 = sphi 0, %s137
    %s154 = sphi 0, %s138
  $region4: #{cnn_pre_forward.5} parent=0 // loop_header_branch
    %13 = sbr.rel (%p11) target = $region8
  $region5: #{cnn_pre_forward.5} parent=0 // loop_body
    %s15 = ssub.s32 %s10, 1
    %s16 = ssub.s32 %s10, 2
    %s26 = sadd.s32 1, %s19
    %p27 = scmp.ge.s32.totalorder %s26, 3
    %s28 = scalar_select %p27, 0, %s26
    %s29 = sadd.s32 1, %s18
    %s30 = scalar_select %p27, %s29, %s18
    %p31 = scmp.ge.s32.totalorder %s30, 12
    %s32 = scalar_select %p31, 0, %s30
    %s33 = sadd.s32 1, %s17
    %s34 = scalar_select %p31, %s33, %s17
    %p35 = scmp.ge.s32.totalorder %s34, 2
    %s36 = scalar_select %p35, 0, %s34
    %s37 = sadd.s32 %s18, %s19
    %s38 = sadd.s32 %s32, %s28
    %s39 = ssub.s32 %s17, %s36
    %s40 = ssub.s32 %s37, %s38
    %s41 = sor.u32 %s39, %s40
    %p42 = scmp.eq.s32.totalorder %s41, 0
    %s44 = sadd.s32 %s43, 1
    %s45 = scalar_select %p42, %s43, %s44
    %p48 = pneg %p42
    %p49 = scmp.eq.s32.totalorder %s10, 71
    %p50 = por %p48, %p49
    %p51 = scmp.ne.s32.totalorder %s43, %s46
    %p52 = scmp.eq.s32.totalorder %s10, 0
    %p53 = por %p51, %p52
    %p54 = scmp.ne.s32.totalorder %s43, %s46
    %p55 = scmp.eq.s32.totalorder %s15, 71
    %p56 = por %p54, %p55
    %p57 = scmp.ne.s32.totalorder %s46, %s47
    %p58 = scmp.eq.s32.totalorder %s15, 0
    %p59 = por %p57, %p58
    %p60 = scmp.ne.s32.totalorder %s46, %s47
    %p61 = scmp.eq.s32.totalorder %s16, 71
    %p62 = por %p60, %p61
    %p64 = scmp.ne.s32.totalorder %s47, %s63
    %p65 = scmp.eq.s32.totalorder %s16, 0
    %p66 = por %p64, %p65
    %s68 = sadd.s32 %s67, 1
    %p71 = scmp.eq.s32.totalorder %s10, 71
    %p72 = scmp.ne.s32.totalorder %s67, %s69
    %p73 = scmp.eq.s32.totalorder %s10, 0
    %p74 = por %p72, %p73
    %p75 = scmp.ne.s32.totalorder %s67, %s69
    %p76 = scmp.eq.s32.totalorder %s15, 71
    %p77 = por %p75, %p76
    %p78 = scmp.ne.s32.totalorder %s69, %s70
    %p79 = scmp.eq.s32.totalorder %s15, 0
    %p80 = por %p78, %p79
    %p81 = scmp.ne.s32.totalorder %s69, %s70
    %p82 = scmp.eq.s32.totalorder %s16, 71
    %p83 = por %p81, %p82
    %p85 = scmp.ne.s32.totalorder %s70, %s84
    %p86 = scmp.eq.s32.totalorder %s16, 0
    %p87 = por %p85, %p86
    %s89 = sadd.s32 %s88, 1
    %p92 = scmp.eq.s32.totalorder %s10, 71
    %p93 = scmp.ne.s32.totalorder %s88, %s90
    %p94 = scmp.eq.s32.totalorder %s10, 0
    %p95 = por %p93, %p94
    %p96 = scmp.ne.s32.totalorder %s88, %s90
    %p97 = scmp.eq.s32.totalorder %s15, 71
    %p98 = por %p96, %p97
    %p99 = scmp.ne.s32.totalorder %s90, %s91
    %p100 = scmp.eq.s32.totalorder %s15, 0
    %p101 = por %p99, %p100
    %p102 = scmp.ne.s32.totalorder %s90, %s91
    %p103 = scmp.eq.s32.totalorder %s16, 71
    %p104 = por %p102, %p103
    %p106 = scmp.ne.s32.totalorder %s91, %s105
    %p107 = scmp.eq.s32.totalorder %s16, 0
    %p108 = por %p106, %p107
    %s110 = sadd.s32 %s109, 1
    %p113 = scmp.eq.s32.totalorder %s10, 71
    %p114 = scmp.ne.s32.totalorder %s109, %s111
    %p115 = scmp.eq.s32.totalorder %s10, 0
    %p116 = por %p114, %p115
    %p117 = scmp.ne.s32.totalorder %s109, %s111
    %p118 = scmp.eq.s32.totalorder %s15, 71
    %p119 = por %p117, %p118
    %p120 = scmp.ne.s32.totalorder %s111, %s112
    %p121 = scmp.eq.s32.totalorder %s15, 0
    %p122 = por %p120, %p121
    %p123 = scmp.ne.s32.totalorder %s111, %s112
    %p124 = scmp.eq.s32.totalorder %s16, 71
    %p125 = por %p123, %p124
    %p127 = scmp.ne.s32.totalorder %s112, %s126
    %p128 = scmp.eq.s32.totalorder %s16, 0
    %p129 = por %p127, %p128
    %s130 = ssub.s32 %s17, %s36
    %s131 = ssub.s32 %s18, %s32
    %s132 = sor.u32 %s130, %s131
    %p133 = scmp.eq.s32.totalorder %s132, 0
    %s135 = sadd.s32 %s134, 1
    %s136 = scalar_select %p133, %s134, %s135
    %p139 = pneg %p133
    %p140 = scmp.eq.s32.totalorder %s10, 71
    %p141 = por %p139, %p140
    %p142 = scmp.ne.s32.totalorder %s134, %s137
    %p143 = scmp.eq.s32.totalorder %s10, 0
    %p144 = por %p142, %p143
    %p145 = scmp.ne.s32.totalorder %s134, %s137
    %p146 = scmp.eq.s32.totalorder %s15, 71
    %p147 = por %p145, %p146
    %p148 = scmp.ne.s32.totalorder %s137, %s138
    %p149 = scmp.eq.s32.totalorder %s15, 0
    %p150 = por %p148, %p149
    %p151 = scmp.ne.s32.totalorder %s137, %s138
    %p152 = scmp.eq.s32.totalorder %s16, 71
    %p153 = por %p151, %p152
    %p155 = scmp.ne.s32.totalorder %s138, %s154
    %p156 = scmp.eq.s32.totalorder %s16, 0
    %p157 = por %p155, %p156
    %p158 = scmp.le.s32.totalorder 1, %s10
    %p159 = scmp.lt.s32.totalorder %s10, 73
    %p160 = pnand %p158, %p159
    %p161 = pneg %p160
    // Predicated region
    $region9: #{cnn_pre_forward.5} parent=5 // pred_check
      _
    $region10: #{cnn_pre_forward.5} parent=5 // pred_check_branch
      %163 = sbr.rel (%p160) target = $region12
    $region11: #{cnn_pre_forward.5} parent=5 // pred_region
      %s164 = ssub.s32 %s10, 1
      // Predicated region
      $region13: #{cnn_pre_forward.5} parent=11 // pred_check
        %p165 = pneg %p80
      $region14: #{cnn_pre_forward.5} parent=11 // pred_check_branch
        %167 = sbr.rel (%p165) target = $region16
      $region15: #{cnn_pre_forward.5} parent=11 // pred_region
        _
      $region16: #{cnn_pre_forward.5} parent=11 // pred_fallthru
        _
      // Predicated region
      $region17: #{cnn_pre_forward.5} parent=11 // pred_check
        %p168 = pneg %p101
      $region18: #{cnn_pre_forward.5} parent=11 // pred_check_branch
        %170 = sbr.rel (%p168) target = $region20
      $region19: #{cnn_pre_forward.5} parent=11 // pred_region
        _
      $region20: #{cnn_pre_forward.5} parent=11 // pred_fallthru
        _
      // Predicated region
      $region21: #{cnn_pre_forward.5} parent=11 // pred_check
        %p171 = pneg %p122
      $region22: #{cnn_pre_forward.5} parent=11 // pred_check_branch
        %173 = sbr.rel (%p171) target = $region24
      $region23: #{cnn_pre_forward.5} parent=11 // pred_region
        _
      $region24: #{cnn_pre_forward.5} parent=11 // pred_fallthru
        _
    $region12: #{cnn_pre_forward.5} parent=5 // pred_fallthru
      _
    %p174 = scmp.lt.s32.totalorder %s10, 72
    // Predicated region
    $region25: #{cnn_pre_forward.5} parent=5 // pred_check
      %p175 = pneg %p174
    $region26: #{cnn_pre_forward.5} parent=5 // pred_check_branch
      %177 = sbr.rel (%p175) target = $region28
    $region27: #{cnn_pre_forward.5} parent=5 // pred_region
      // Predicated region
      $region29: #{cnn_pre_forward.5} parent=27 // pred_check
        %p178 = pneg %p53
      $region30: #{cnn_pre_forward.5} parent=27 // pred_check_branch
        %180 = sbr.rel (%p178) target = $region32
      $region31: #{cnn_pre_forward.5} parent=27 // pred_region
        %s181 = sadd.s32 %s18, %s19
        %p182 = scmp.lt.s32.totalorder %s17, 1
        %s183 = scalar_select %p182, %s17, 1
        %p184 = scmp.lt.s32.totalorder %s181, 13
        %s185 = scalar_select %p184, %s181, 13
        %s186 = smul.addr %s185, 2
        %s187 = smul.addr %s183, 28
        %s188 = sadd.s32 %s186, %s187
        %s189 = scalar_lea.vmem %s0, %s188
        %s190 = sadd.s32 %s18, %s19
      $region32: #{cnn_pre_forward.5} parent=27 // pred_fallthru
        _
    $region28: #{cnn_pre_forward.5} parent=5 // pred_fallthru
      _
    %p191 = scmp.le.s32.totalorder 1, %s10
    %p192 = scmp.lt.s32.totalorder %s10, 73
    %p193 = pnand %p191, %p192
    %p194 = pneg %p193
    // Predicated region
    $region33: #{cnn_pre_forward.5} parent=5 // pred_check
      _
    $region34: #{cnn_pre_forward.5} parent=5 // pred_check_branch
      %196 = sbr.rel (%p193) target = $region36
    $region35: #{cnn_pre_forward.5} parent=5 // pred_region
      %s197 = ssub.s32 %s10, 1
      %s198 = sadd.s32 %s21, %s22
      %p199 = scmp.lt.s32.totalorder %s20, 1
      %s200 = scalar_select %p199, %s20, 1
      %p201 = scmp.lt.s32.totalorder %s198, 13
      %s202 = scalar_select %p201, %s198, 13
      %s203 = smul.addr %s202, 2
      %s204 = smul.addr %s200, 28
      %s205 = sadd.s32 %s203, %s204
      %s206 = scalar_lea.vmem %s0, %s205
      %p207 = pneg %p59
      %p208 = pneg %p56
      %p209 = pneg %p80
      %p210 = pneg %p77
      %p211 = pneg %p101
      %p212 = pneg %p98
      %p213 = pneg %p122
      %p214 = pneg %p119
      %p215 = pneg %p150
      %p216 = pneg %p147
      %p217 = scmp.lt.s32.totalorder %s20, 1
      %s218 = scalar_select %p217, %s20, 1
      %p219 = scmp.lt.s32.totalorder %s21, 11
      %s220 = scalar_select %p219, %s21, 11
      %s221 = smul.addr %s220, 2
      %s222 = smul.addr %s218, 24
      %s223 = sadd.s32 %s221, %s222
      %s224 = smul.addr %s223, 4
      %s225 = scalar_lea.vmem %s4, %s224
      %s226 = sadd.s32 %s21, %s22
      %p227 = scmp.lt.s32.totalorder %s20, 1
      %s228 = scalar_select %p227, %s20, 1
      %p229 = scmp.lt.s32.totalorder %s226, 13
      %s230 = scalar_select %p229, %s226, 13
      %s231 = smul.addr %s230, 2
      %s232 = smul.addr %s228, 28
      %s233 = sadd.s32 %s231, %s232
      %s234 = scalar_lea.vmem %s0, %s233
      %s235 = sadd.s32 %s21, %s22
      %p236 = scmp.lt.s32.totalorder %s20, 1
      %s237 = scalar_select %p236, %s20, 1
      %p238 = scmp.lt.s32.totalorder %s21, 11
      %s239 = scalar_select %p238, %s21, 11
      %s240 = smul.addr %s239, 2
      %s241 = smul.addr %s237, 24
      %s242 = sadd.s32 %s240, %s241
      %s243 = smul.addr %s242, 4
      %s244 = scalar_lea.vmem %s4, %s243
      %v246 = vld [vmem:[%s234] sm:$0x3]
      %v249 = vunpack.c.l.s4 1935823168
      %v250 = vunpack.c.0.s8 %v249
      %v251 = vlaneseq
      %v252 = vshrl.u32 %v251, 7
      %v253 = vsub.s32 %v250, %v252
      %v254 = vrot.slane %v246, %v253
      %v256 = vunpack.c.l.s4 1935823168
      %v257 = vunpack.c.0.s8 %v256
      %v258 = vlaneseq
      %v259 = vshrl.u32 %v258, 7
      %v260 = vsub.s32 %v257, %v259
      %v261 = vrot.slane %v254, %v260
      %vm263 = vcmask 1040384
      %vm264 = vsmask.f32 256
      %vm265 = vmand %vm263, %vm264
      %vm266 = vcmask 307204
      %vm267 = vsmask.f32 4352
      %vm268 = vmand %vm266, %vm267
      %vm269 = vmor %vm268, %vm265
      %v270 = vld [vmem:[#allocation3] sm:$0x11]
      %v271 = vsel %vm269, %v261, %v270
      %272 = vst [vmem:[#allocation3] sm:$0x11] %v271
      %v274 = vshll.u32 %v261, 16
      %276 = vrot.lane.b32.xlu0 %v274, 127
      %v277 = vpop.permute.xlu0 %276
      %v278 = vrot.slane %v277, 4
      %vm279 = vcmask 1039360
      %v280 = vsel %vm279, %v277, %v278
      %vm282 = vsmask.f32 7938
      %vm283 = vmand %vm263, %vm282
      %vm284 = vsmask.f32 7954
      %vm285 = vmand %vm266, %vm284
      %vm286 = vmor %vm285, %vm283
      %v287 = vld [vmem:[#allocation3] sm:$0x11]
      %v288 = vsel %vm286, %v280, %v287
      %289 = vst [vmem:[#allocation3] sm:$0x11] %v288
      %v290 = vcombine.low %v254, %v254
      %v292 = vunpack.c.l.s4 1935823168
      %v293 = vunpack.c.0.s8 %v292
      %v294 = vlaneseq
      %v295 = vshrl.u32 %v294, 7
      %v296 = vsub.s32 %v293, %v295
      %v297 = vrot.slane %v290, %v296
      %298 = vrot.lane.b32.xlu0 %v297, 126
      %v299 = vpop.permute.xlu0 %298
      %v300 = vrot.slane %v299, 4
      %vm301 = vcmask 1031168
      %v302 = vsel %vm301, %v299, %v300
      %vm304 = vcmask 1041409
      %vm305 = vsmask.f32 1280
      %vm306 = vmand %vm304, %vm305
      %vm307 = vcmask 308229
      %vm308 = vsmask.f32 5376
      %vm309 = vmand %vm307, %vm308
      %vm310 = vmor %vm309, %vm306
      %v311 = vld [vmem:[#allocation3] sm:$0x22]
      %v312 = vsel %vm310, %v302, %v311
      %313 = vst [vmem:[#allocation3] sm:$0x22] %v312
      %v314 = vrot.slane %v274, 7
      %315 = vrot.lane.b32.xlu0 %v314, 114
      %v316 = vpop.permute.xlu0 %315
      %v317 = vrot.slane %v316, 4
      %vm318 = vcmask 932864
      %v319 = vsel %vm318, %v316, %v317
      %vm321 = vsmask.f32 7942
      %vm322 = vmand %vm304, %vm321
      %vm323 = vsmask.f32 7958
      %vm324 = vmand %vm307, %vm323
      %vm325 = vmor %vm324, %vm322
      %v326 = vld [vmem:[#allocation3] sm:$0x22]
      %v327 = vsel %vm325, %v319, %v326
      %328 = vst [vmem:[#allocation3] sm:$0x22] %v327
      %v329 = vcombine.low %v246, %v246
      %v331 = vunpack.c.l.s4 1935823168
      %v332 = vunpack.c.0.s8 %v331
      %v333 = vlaneseq
      %v334 = vshrl.u32 %v333, 7
      %v335 = vsub.s32 %v332, %v334
      %v336 = vrot.slane %v329, %v335
      %v338 = vunpack.c.l.s4 1935823168
      %v339 = vunpack.c.0.s8 %v338
      %v340 = vlaneseq
      %v341 = vshrl.u32 %v340, 7
      %v342 = vsub.s32 %v339, %v341
      %v343 = vrot.slane %v336, %v342
      %344 = vrot.lane.b32.xlu0 %v343, 113
      %v345 = vpop.permute.xlu0 %344
      %v346 = vrot.slane %v345, 4
      %vm347 = vcmask 924672
      %v348 = vsel %vm347, %v345, %v346
      %vm350 = vcmask 1042434
      %vm351 = vsmask.f32 2304
      %vm352 = vmand %vm350, %vm351
      %vm353 = vcmask 309254
      %vm354 = vsmask.f32 6400
      %vm355 = vmand %vm353, %vm354
      %vm356 = vmor %vm355, %vm352
      %v357 = vld [vmem:[#allocation3] sm:$0x44]
      %v358 = vsel %vm356, %v348, %v357
      %359 = vst [vmem:[#allocation3] sm:$0x44] %v358
      %v360 = vrot.slane %v274, 6
      %361 = vrot.lane.b32.xlu0 %v360, 112
      %v362 = vpop.permute.xlu0 %361
      %v363 = vrot.slane %v362, 4
      %vm364 = vcmask 916480
      %v365 = vsel %vm364, %v362, %v363
      %vm367 = vsmask.f32 7946
      %vm368 = vmand %vm350, %vm367
      %vm369 = vsmask.f32 7962
      %vm370 = vmand %vm353, %vm369
      %vm371 = vmor %vm370, %vm368
      %v372 = vld [vmem:[#allocation3] sm:$0x44]
      %v373 = vsel %vm371, %v365, %v372
      %374 = vst [vmem:[#allocation3] sm:$0x44] %v373
      %v375 = vcombine.low %v336, %v336
      %v377 = vunpack.c.l.s4 1935823168
      %v378 = vunpack.c.0.s8 %v377
      %v379 = vlaneseq
      %v380 = vshrl.u32 %v379, 7
      %v381 = vsub.s32 %v378, %v380
      %v382 = vrot.slane %v375, %v381
      %383 = vrot.lane.b32.xlu0 %v382, 100
      %v384 = vpop.permute.xlu0 %383
      %v385 = vrot.slane %v384, 4
      %vm386 = vcmask 818176
      %v387 = vsel %vm386, %v384, %v385
      %vm389 = vcmask 1043459
      %vm390 = vsmask.f32 3328
      %vm391 = vmand %vm389, %vm390
      %vm392 = vcmask 310279
      %vm393 = vsmask.f32 7424
      %vm394 = vmand %vm392, %vm393
      %vm395 = vmor %vm394, %vm391
      %v396 = vld [vmem:[#allocation3] sm:$0x88]
      %v397 = vsel %vm395, %v387, %v396
      %398 = vst [vmem:[#allocation3] sm:$0x88] %v397
      %v399 = vrot.slane %v274, 5
      %400 = vrot.lane.b32.xlu0 %v399, 99
      %v401 = vpop.permute.xlu0 %400
      %v402 = vrot.slane %v401, 4
      %vm403 = vcmask 809984
      %v404 = vsel %vm403, %v401, %v402
      %vm406 = vsmask.f32 7950
      %vm407 = vmand %vm389, %vm406
      %vm408 = vsmask.f32 7966
      %vm409 = vmand %vm392, %vm408
      %vm410 = vmor %vm409, %vm407
      %v411 = vld [vmem:[#allocation3] sm:$0x88]
      %v412 = vsel %vm410, %v404, %v411
      %413 = vst [vmem:[#allocation3] sm:$0x88] %v412
      %414 = vrot.lane.b32.xlu0 %v261, 98
      %v415 = vpop.permute.xlu0 %414
      %v416 = vrot.slane %v415, 4
      %vm417 = vcmask 801792
      %v418 = vsel %vm417, %v415, %v416
      %v420 = vld [vmem:[#allocation3 + $0x8] sm:$0x11]
      %v421 = vsel %vm269, %v418, %v420
      %422 = vst [vmem:[#allocation3 + $0x8] sm:$0x11] %v421
      %s423 = smul.addr %s22, 4
      %s424 = scalar_lea.vmem %s1, %s423
      %v425 = vld [vmem:[%s424] sm:$0xf]
      %v426 = vld [vmem:[#allocation3] sm:$0xff]
      %v427 = vld [vmem:[#allocation3 + $0x8] sm:$0x11]
      %v430 = vunpack.c.l.b16 %v426
      %v431 = vunpack.c.h.b16 %v426
      %v432 = vunpack.c.l.b16 %v427
      %v433 = vunpack.c.h.b16 %v427
      %v434 = vpack.c.b16 %v432, %v430
      %v435 = vpack.c.b16 %v433, %v431
      %vm436 = vcmask 72704
      %v438 = vsel %vm436, %v425, 0
      %vm440 = vcmask 1043456
      %vm441 = vcmask 1044480
      %v442 = vsel %vm440, 4294967295, 65535
      %v443 = vsel %vm441, %v442, 0
      %v445 = vand.u32 %v434, %v443
      %v448 = vand.u32 %v435, %v443
      %450 = vmatprep.subr.bf16.mxu0 %v448
      %451 = vmatpush1.bf16.msra.mxu0 %v445
      %452 = vmatprep.subr.bf16.mxu0 0
      %453 = vmatpush1.bf16.msra.mxu0 0
      %454 = vmatprep.subr.bf16.mxu0 0
      %455 = vmatpush1.bf16.msra.mxu0 0
      %456 = vmatprep.subr.bf16.mxu0 0
      %457 = vmatpush1.bf16.msra.mxu0 0
      %458 = vmatprep.subr.bf16.mxu0 0
      %459 = vmatpush1.bf16.msra.mxu0 0
      %460 = vmatprep.subr.bf16.mxu0 0
      %461 = vmatpush1.bf16.msra.mxu0 0
      %462 = vmatprep.subr.bf16.mxu0 0
      %463 = vmatpush1.bf16.msra.mxu0 0
      %464 = vmatprep.subr.bf16.mxu0 0
      %465 = vmatpush1.bf16.msra.mxu0 0
      %466 = vmatprep.subr.bf16.mxu0 0
      %467 = vmatpush1.bf16.msra.mxu0 0
      %468 = vmatprep.subr.bf16.mxu0 0
      %469 = vmatpush1.bf16.msra.mxu0 0
      %470 = vmatprep.subr.bf16.mxu0 0
      %471 = vmatpush1.bf16.msra.mxu0 0
      %472 = vmatprep.subr.bf16.mxu0 0
      %473 = vmatpush1.bf16.msra.mxu0 0
      %474 = vmatprep.subr.bf16.mxu0 0
      %475 = vmatpush1.bf16.msra.mxu0 0
      %476 = vmatprep.subr.bf16.mxu0 0
      %477 = vmatpush1.bf16.msra.mxu0 0
      %478 = vmatprep.subr.bf16.mxu0 0
      %479 = vmatpush1.bf16.msra.mxu0 0
      %480 = vmatprep.subr.bf16.mxu0 0
      %481 = vmatpush1.bf16.msra.mxu0 0
      %482 = vmatprep.mubr.bf16.mxu0 0
      %483 = vmatmul.mubr.bf16.gmra.mrb[0].mxu0 %v438
      %v484 = vpop.f32.mrb[0].mxu0
      %v485 = vadd.f32 0.0, %v484
      %v486 = vpop.f32.mrb[0].mxu0
      %v487 = vadd.f32 0.0, %v486
      %v488 = vpop.f32.mrb[0].mxu0
      %v489 = vpop.f32.mrb[0].mxu0
      %490 = vdwg.mxu0
      %p491 = scmp.eq.s32.totalorder %s22, 0
      // Predicated region
      $region37: #{cnn_pre_forward.5} parent=35 // pred_check
        %p492 = pneg %p491
      $region38: #{cnn_pre_forward.5} parent=35 // pred_check_branch
        %494 = sbr.rel (%p492) target = $region40
      $region39: #{cnn_pre_forward.5} parent=35 // pred_region
        %495 = vst [vmem:[#allocation2] sm:$0xff] %v485
        %vm496 = vcmask 310272
        %497 = vst.msk [vmem:[#allocation2 + $0x8] sm:$0xff] %vm496, %v487
      $region40: #{cnn_pre_forward.5} parent=35 // pred_fallthru
        _
      %p498 = scmp.ne.s32.totalorder %s22, 0
      // Predicated region
      $region41: #{cnn_pre_forward.5} parent=35 // pred_check
        %p499 = pneg %p498
      $region42: #{cnn_pre_forward.5} parent=35 // pred_check_branch
        %501 = sbr.rel (%p499) target = $region44
      $region43: #{cnn_pre_forward.5} parent=35 // pred_region
        %v502 = vld [vmem:[#allocation2] sm:$0xff]
        %v503 = vld [vmem:[#allocation2 + $0x8] sm:$0xff]
        %v504 = vadd.f32 %v502, %v485
        %v505 = vadd.f32 %v503, %v487
        %506 = vst [vmem:[#allocation2] sm:$0xff] %v504
        %vm507 = vcmask 310272
        %508 = vst.msk [vmem:[#allocation2 + $0x8] sm:$0xff] %vm507, %v505
      $region44: #{cnn_pre_forward.5} parent=35 // pred_fallthru
        _
      %p509 = scmp.eq.s32.totalorder %s22, 2
      // Predicated region
      $region45: #{cnn_pre_forward.5} parent=35 // pred_check
        %p510 = pneg %p509
      $region46: #{cnn_pre_forward.5} parent=35 // pred_check_branch
        %512 = sbr.rel (%p510) target = $region48
      $region47: #{cnn_pre_forward.5} parent=35 // pred_region
        %v513 = vld [vmem:[#allocation2] sm:$0xff]
        %v514 = vld [vmem:[#allocation2 + $0x8] sm:$0xff]
        %v515 = vld [vmem:[%s2] sm:$0xff]
        %517 = vset.pattern.permute.xlu0 0
        %518 = vperm.xlu0 %517, %v515
        %v519 = vpop.permute.xlu0 %518
        %v521 = vadd.f32 %v513, %v519
        %v522 = vadd.f32 %v514, %v519
        %vm523 = vcmp.gt.f32.partialorder %v521, 0.0
        %vm524 = vcmp.gt.f32.partialorder %v522, 0.0
        %v525 = vmul.f32 %v521, 0.01
        %v526 = vmul.f32 %v522, 0.01
        %v527 = vsel %vm523, %v521, %v525
        %v528 = vsel %vm524, %v522, %v526
        %v529 = vld [vmem:[%s3] sm:$0x3]
        %v531 = vlaneseq
        %v532 = vshrl.u32 %v531, 7
        %v533 = vsub.s32 0, %v532
        %v534 = vrot.slane %v529, %v533
        %v535 = vlaneseq
        %v536 = vshrl.u32 %v535, 7
        %v537 = vsub.s32 1, %v536
        %v538 = vrot.slane %v529, %v537
        %v541 = vmul.f32 %v527, %v534
        %v542 = vmul.f32 %v528, %v538
        %v543 = vpack.c.bf16 %v541, %v541
        %v544 = vpack.c.bf16 %v542, %v542
        %v547 = vunpack.c.l.b16 %v543
        %v548 = vunpack.c.l.b16 %v544
        %v549 = vpack.c.b16 %v548, %v547
        %vm551 = vcmask 310276
        %vm552 = vmor %vm551, %vm440
        %553 = vst.msk [vmem:[%s244] sm:$0xff] %vm552, %v549
      $region48: #{cnn_pre_forward.5} parent=35 // pred_fallthru
        _
      %p554 = scmp.lt.s32.totalorder %s20, 1
      %s555 = scalar_select %p554, %s20, 1
      %p556 = scmp.lt.s32.totalorder %s21, 11
      %s557 = scalar_select %p556, %s21, 11
      %s558 = smul.addr %s557, 2
      %s559 = smul.addr %s555, 24
      %s560 = sadd.s32 %s558, %s559
      %s561 = smul.addr %s560, 4
      %s562 = scalar_lea.vmem %s4, %s561
      // Predicated region
      $region49: #{cnn_pre_forward.5} parent=35 // pred_check
        %p563 = pneg %p147
      $region50: #{cnn_pre_forward.5} parent=35 // pred_check_branch
        %565 = sbr.rel (%p563) target = $region52
      $region51: #{cnn_pre_forward.5} parent=35 // pred_region
        _
      $region52: #{cnn_pre_forward.5} parent=35 // pred_fallthru
        _
    $region36: #{cnn_pre_forward.5} parent=5 // pred_fallthru
      _
    %p566 = scmp.le.s32.totalorder 2, %s10
    // Predicated region
    $region53: #{cnn_pre_forward.5} parent=5 // pred_check
      %p567 = pneg %p566
    $region54: #{cnn_pre_forward.5} parent=5 // pred_check_branch
      %569 = sbr.rel (%p567) target = $region56
    $region55: #{cnn_pre_forward.5} parent=5 // pred_region
      %s570 = ssub.s32 %s10, 2
      // Predicated region
      $region57: #{cnn_pre_forward.5} parent=55 // pred_check
        %p571 = pneg %p153
      $region58: #{cnn_pre_forward.5} parent=55 // pred_check_branch
        %573 = sbr.rel (%p571) target = $region60
      $region59: #{cnn_pre_forward.5} parent=55 // pred_region
        %p574 = scmp.lt.s32.totalorder %s23, 1
        %s575 = scalar_select %p574, %s23, 1
        %p576 = scmp.lt.s32.totalorder %s24, 11
        %s577 = scalar_select %p576, %s24, 11
        %s578 = smul.addr %s577, 2
        %s579 = smul.addr %s575, 24
        %s580 = sadd.s32 %s578, %s579
        %s581 = smul.addr %s580, 4
        %s582 = scalar_lea.vmem %s4, %s581
      $region60: #{cnn_pre_forward.5} parent=55 // pred_fallthru
        _
    $region56: #{cnn_pre_forward.5} parent=5 // pred_fallthru
      _
  $region6: #{cnn_pre_forward.5} parent=0 // loop_footer
    %s14 = sadd.s32 1, %s10
  $region7: #{cnn_pre_forward.5} parent=0 // loop_footer_branch
    %9 = sbr.rel target = $region3
  $region8: #{cnn_pre_forward.5} parent=0 // loop_exit
    _

// kernel: cnn_pre_forward.8
$region0: #{cnn_pre_forward.8}
  #allocation0 [shape = 'u32[]', space=smem, size = 0x4, offset = 0x4, fixed_abs, tag = 'smem constant byte address 0x4 - core index']
  #allocation1 [shape = 'u32[144,128]{1,0:T(1,128)}', space=vmem, size = 0x12000, scoped, tag = 'internal scratch']
  %s0 = inlined_call_operand.vmem [shape: bf16[2,4,16,22], index: 0, kind: input, shape index: {}]
  %s1 = inlined_call_operand.vmem [shape: bf16[15,4], index: 1, kind: input, shape index: {}]
  %s2 = inlined_call_operand.vmem [shape: bf16[2,2,16,4], index: 2, kind: output, shape index: {}]
  %s3 = sld [smem:[#allocation0]]
  $region41: #{cnn_pre_forward.8} parent=0
    _
  %s5 = ssub.s32 1, %s3
  %s6 = scalar_select 0, %s5, %s3
  loop: start=0, step=1, limit=6
  $region2: #{cnn_pre_forward.8} parent=0 // loop_pre_header
    _
  $region3: #{cnn_pre_forward.8} parent=0 // loop_header
    %s8 = sphi 0, %s12
    %p9 = scmp.ge.s32.totalorder %s8, 6
    %s15 = sphi 0, %s27
    %s16 = sphi 0, %s23
    %s17 = sphi 0, %s15
    %s18 = sphi 0, %s16
    %s19 = sphi 0, %s17
    %s20 = sphi 0, %s18
    %s32 = sphi 0, %s34
    %s35 = sphi 0, %s32
    %s36 = sphi 0, %s35
    %s52 = sphi 0, %s36
    %s56 = sphi 0, %s56
    %s58 = sphi 0, %s56
    %s59 = sphi 0, %s58
    %s73 = sphi 0, %s59
    %s81 = sphi 0, %s83
    %s84 = sphi 0, %s81
    %s85 = sphi 0, %s84
    %s101 = sphi 0, %s85
  $region4: #{cnn_pre_forward.8} parent=0 // loop_header_branch
    %11 = sbr.rel (%p9) target = $region8
  $region5: #{cnn_pre_forward.8} parent=0 // loop_body
    %s13 = ssub.s32 %s8, 1
    %s14 = ssub.s32 %s8, 2
    %s21 = sadd.s32 1, %s16
    %p22 = scmp.ge.s32.totalorder %s21, 2
    %s23 = scalar_select %p22, 0, %s21
    %s24 = sadd.s32 1, %s15
    %s25 = scalar_select %p22, %s24, %s15
    %p26 = scmp.ge.s32.totalorder %s25, 2
    %s27 = scalar_select %p26, 0, %s25
    %s28 = ssub.s32 %s15, %s27
    %s29 = ssub.s32 %s16, %s23
    %s30 = sor.u32 %s28, %s29
    %p31 = scmp.eq.s32.totalorder %s30, 0
    %s33 = sadd.s32 %s32, 1
    %s34 = scalar_select %p31, %s32, %s33
    %p37 = pneg %p31
    %p38 = scmp.eq.s32.totalorder %s8, 3
    %p39 = por %p37, %p38
    %p40 = scmp.ne.s32.totalorder %s32, %s35
    %p41 = scmp.eq.s32.totalorder %s8, 0
    %p42 = por %p40, %p41
    %p43 = scmp.ne.s32.totalorder %s32, %s35
    %p44 = scmp.eq.s32.totalorder %s13, 3
    %p45 = por %p43, %p44
    %p46 = scmp.ne.s32.totalorder %s35, %s36
    %p47 = scmp.eq.s32.totalorder %s13, 0
    %p48 = por %p46, %p47
    %p49 = scmp.ne.s32.totalorder %s35, %s36
    %p50 = scmp.eq.s32.totalorder %s14, 3
    %p51 = por %p49, %p50
    %p53 = scmp.ne.s32.totalorder %s36, %s52
    %p54 = scmp.eq.s32.totalorder %s14, 0
    %p55 = por %p53, %p54
    %s57 = sadd.s32 %s56, 1
    %p60 = scmp.eq.s32.totalorder %s8, 3
    %p61 = scmp.ne.s32.totalorder %s56, %s58
    %p62 = scmp.eq.s32.totalorder %s8, 0
    %p63 = por %p61, %p62
    %p64 = scmp.ne.s32.totalorder %s56, %s58
    %p65 = scmp.eq.s32.totalorder %s13, 3
    %p66 = por %p64, %p65
    %p67 = scmp.ne.s32.totalorder %s58, %s59
    %p68 = scmp.eq.s32.totalorder %s13, 0
    %p69 = por %p67, %p68
    %p70 = scmp.ne.s32.totalorder %s58, %s59
    %p71 = scmp.eq.s32.totalorder %s14, 3
    %p72 = por %p70, %p71
    %p74 = scmp.ne.s32.totalorder %s59, %s73
    %p75 = scmp.eq.s32.totalorder %s14, 0
    %p76 = por %p74, %p75
    %s77 = ssub.s32 %s15, %s27
    %s78 = ssub.s32 %s16, %s23
    %s79 = sor.u32 %s77, %s78
    %p80 = scmp.eq.s32.totalorder %s79, 0
    %s82 = sadd.s32 %s81, 1
    %s83 = scalar_select %p80, %s81, %s82
    %p86 = pneg %p80
    %p87 = scmp.eq.s32.totalorder %s8, 3
    %p88 = por %p86, %p87
    %p89 = scmp.ne.s32.totalorder %s81, %s84
    %p90 = scmp.eq.s32.totalorder %s8, 0
    %p91 = por %p89, %p90
    %p92 = scmp.ne.s32.totalorder %s81, %s84
    %p93 = scmp.eq.s32.totalorder %s13, 3
    %p94 = por %p92, %p93
    %p95 = scmp.ne.s32.totalorder %s84, %s85
    %p96 = scmp.eq.s32.totalorder %s13, 0
    %p97 = por %p95, %p96
    %p98 = scmp.ne.s32.totalorder %s84, %s85
    %p99 = scmp.eq.s32.totalorder %s14, 3
    %p100 = por %p98, %p99
    %p102 = scmp.ne.s32.totalorder %s85, %s101
    %p103 = scmp.eq.s32.totalorder %s14, 0
    %p104 = por %p102, %p103
    %p105 = scmp.le.s32.totalorder 1, %s8
    %p106 = scmp.lt.s32.totalorder %s8, 5
    %p107 = pnand %p105, %p106
    %p108 = pneg %p107
    // Predicated region
    $region9: #{cnn_pre_forward.8} parent=5 // pred_check
      _
    $region10: #{cnn_pre_forward.8} parent=5 // pred_check_branch
      %110 = sbr.rel (%p107) target = $region12
    $region11: #{cnn_pre_forward.8} parent=5 // pred_region
      %s111 = ssub.s32 %s8, 1
      // Predicated region
      $region13: #{cnn_pre_forward.8} parent=11 // pred_check
        %p112 = pneg %p69
      $region14: #{cnn_pre_forward.8} parent=11 // pred_check_branch
        %114 = sbr.rel (%p112) target = $region16
      $region15: #{cnn_pre_forward.8} parent=11 // pred_region
        _
      $region16: #{cnn_pre_forward.8} parent=11 // pred_fallthru
        _
    $region12: #{cnn_pre_forward.8} parent=5 // pred_fallthru
      _
    %p115 = scmp.lt.s32.totalorder %s8, 4
    // Predicated region
    $region17: #{cnn_pre_forward.8} parent=5 // pred_check
      %p116 = pneg %p115
    $region18: #{cnn_pre_forward.8} parent=5 // pred_check_branch
      %118 = sbr.rel (%p116) target = $region20
    $region19: #{cnn_pre_forward.8} parent=5 // pred_region
      // Predicated region
      $region21: #{cnn_pre_forward.8} parent=19 // pred_check
        %p119 = pneg %p42
      $region22: #{cnn_pre_forward.8} parent=19 // pred_check_branch
        %121 = sbr.rel (%p119) target = $region24
      $region23: #{cnn_pre_forward.8} parent=19 // pred_region
        %s122 = smul.u32 2, %s16
        %p123 = scmp.lt.s32.totalorder %s15, 1
        %s124 = scalar_select %p123, %s15, 1
        %p125 = scmp.lt.s32.totalorder %s122, 3
        %s126 = scalar_select %p125, %s122, 3
        %s127 = smul.addr %s126, 2
        %s128 = smul.addr %s124, 8
        %s129 = sadd.s32 %s127, %s128
        %s130 = smul.addr %s129, 4
        %s131 = scalar_lea.vmem %s0, %s130
        %s132 = smul.u32 2, %s16
      $region24: #{cnn_pre_forward.8} parent=19 // pred_fallthru
        _
    $region20: #{cnn_pre_forward.8} parent=5 // pred_fallthru
      _
    %p133 = scmp.le.s32.totalorder 1, %s8
    %p134 = scmp.lt.s32.totalorder %s8, 5
    %p135 = pnand %p133, %p134
    %p136 = pneg %p135
    // Predicated region
    $region25: #{cnn_pre_forward.8} parent=5 // pred_check
      _
    $region26: #{cnn_pre_forward.8} parent=5 // pred_check_branch
      %138 = sbr.rel (%p135) target = $region28
    $region27: #{cnn_pre_forward.8} parent=5 // pred_region
      %s139 = ssub.s32 %s8, 1
      %s140 = smul.u32 2, %s18
      %p141 = scmp.lt.s32.totalorder %s17, 1
      %s142 = scalar_select %p141, %s17, 1
      %p143 = scmp.lt.s32.totalorder %s140, 3
      %s144 = scalar_select %p143, %s140, 3
      %s145 = smul.addr %s144, 2
      %s146 = smul.addr %s142, 8
      %s147 = sadd.s32 %s145, %s146
      %s148 = smul.addr %s147, 4
      %s149 = scalar_lea.vmem %s0, %s148
      %p150 = pneg %p48
      %p151 = pneg %p45
      %p152 = pneg %p69
      %p153 = pneg %p66
      %p154 = pneg %p97
      %p155 = pneg %p94
      %p156 = scmp.lt.s32.totalorder %s17, 1
      %s157 = scalar_select %p156, %s17, 1
      %p158 = scmp.lt.s32.totalorder %s18, 1
      %s159 = scalar_select %p158, %s18, 1
      %s160 = smul.addr %s159, 2
      %s161 = smul.addr %s157, 4
      %s162 = sadd.s32 %s160, %s161
      %s163 = smul.addr %s162, 4
      %s164 = scalar_lea.vmem %s2, %s163
      %s165 = smul.u32 2, %s18
      %p166 = scmp.lt.s32.totalorder %s17, 1
      %s167 = scalar_select %p166, %s17, 1
      %p168 = scmp.lt.s32.totalorder %s165, 3
      %s169 = scalar_select %p168, %s165, 3
      %s170 = smul.addr %s169, 2
      %s171 = smul.addr %s167, 8
      %s172 = sadd.s32 %s170, %s171
      %s173 = smul.addr %s172, 4
      %s174 = scalar_lea.vmem %s0, %s173
      %s175 = smul.u32 2, %s18
      %p176 = scmp.lt.s32.totalorder %s17, 1
      %s177 = scalar_select %p176, %s17, 1
      %p178 = scmp.lt.s32.totalorder %s18, 1
      %s179 = scalar_select %p178, %s18, 1
      %s180 = smul.addr %s179, 2
      %s181 = smul.addr %s177, 4
      %s182 = sadd.s32 %s180, %s181
      %s183 = smul.addr %s182, 4
      %s184 = scalar_lea.vmem %s2, %s183
      %v186 = vld [vmem:[%s174] sm:$0xf]
      %v187 = vld [vmem:[%s174 + $0x4] sm:$0xf]
      %s188 = scalar_lea.vmem %s174, 8
      %v189 = vld [vmem:[%s188] sm:$0xf]
      %v190 = vld [vmem:[%s188 + $0x4] sm:$0xf]
      %v191 = vmax.bf16 %v186, %v189
      %v192 = vmax.bf16 %v187, %v190
      %195 = vrot.lane.b32.xlu0 %v191, 127
      %v196 = vpop.permute.xlu0 %195
      %197 = vrot.lane.b32.xlu0 %v192, 127
      %v198 = vpop.permute.xlu0 %197
      %v201 = vmax.bf16 %v191, %v196
      %v202 = vmax.bf16 %v192, %v198
      %205 = vrot.lane.b32.xlu0 %v201, 122
      %v206 = vpop.permute.xlu0 %205
      %207 = vrot.lane.b32.xlu0 %v202, 122
      %v208 = vpop.permute.xlu0 %207
      %v211 = vmax.bf16 %v201, %v206
      %v212 = vmax.bf16 %v202, %v208
      %v213 = vld [vmem:[%s1] sm:$0xf]
      %v214 = vld [vmem:[%s1 + $0x4] sm:$0xf]
      %v217 = vunpack.c.l.b16 %v211
      %v218 = vunpack.c.l.b16 %v212
      %v219 = vpack.c.b16 %v218, %v217
      %v222 = vunpack.c.l.b16 %v213
      %v223 = vunpack.c.l.b16 %v214
      %v224 = vpack.c.b16 %v223, %v222
      %vm225 = vcmask 121856
      %v227 = vsel %vm225, %v219, 0
      %vm229 = vcmask 1046528
      %vm230 = vcmask 1047552
      %v231 = vsel %vm229, 4294967295, 65535
      %v232 = vsel %vm230, %v231, 0
      %v234 = vand.u32 %v224, %v232
      %236 = vmatprep.subr.bf16.mxu0 0
      %237 = vmatpush1.bf16.msra.mxu0 %v234
      %238 = vmatprep.subr.bf16.mxu0 0
      %239 = vmatpush1.bf16.msra.mxu0 0
      %240 = vmatprep.subr.bf16.mxu0 0
      %241 = vmatpush1.bf16.msra.mxu0 0
      %242 = vmatprep.subr.bf16.mxu0 0
      %243 = vmatpush1.bf16.msra.mxu0 0
      %244 = vmatprep.subr.bf16.mxu0 0
      %245 = vmatpush1.bf16.msra.mxu0 0
      %246 = vmatprep.subr.bf16.mxu0 0
      %247 = vmatpush1.bf16.msra.mxu0 0
      %248 = vmatprep.subr.bf16.mxu0 0
      %249 = vmatpush1.bf16.msra.mxu0 0
      %250 = vmatprep.subr.bf16.mxu0 0
      %251 = vmatpush1.bf16.msra.mxu0 0
      %252 = vmatprep.subr.bf16.mxu0 0
      %253 = vmatpush1.bf16.msra.mxu0 0
      %254 = vmatprep.subr.bf16.mxu0 0
      %255 = vmatpush1.bf16.msra.mxu0 0
      %256 = vmatprep.subr.bf16.mxu0 0
      %257 = vmatpush1.bf16.msra.mxu0 0
      %258 = vmatprep.subr.bf16.mxu0 0
      %259 = vmatpush1.bf16.msra.mxu0 0
      %260 = vmatprep.subr.bf16.mxu0 0
      %261 = vmatpush1.bf16.msra.mxu0 0
      %262 = vmatprep.subr.bf16.mxu0 0
      %263 = vmatpush1.bf16.msra.mxu0 0
      %264 = vmatprep.subr.bf16.mxu0 0
      %265 = vmatpush1.bf16.msra.mxu0 0
      %266 = vmatprep.subr.bf16.mxu0 0
      %267 = vmatpush1.bf16.msra.mxu0 0
      %268 = vmatprep.mubr.bf16.mxu0 0
      %269 = vmatmul.mubr.bf16.gmra.mrb[0].mxu0 %v227
      %v270 = vpop.f32.mrb[0].mxu0
      %v271 = vadd.f32 0.0, %v270
      %v272 = vpop.f32.mrb[0].mxu0
      %v273 = vpop.f32.mrb[0].mxu0
      %v274 = vadd.f32 0.0, %v273
      %v275 = vpop.f32.mrb[0].mxu0
      %276 = vdwg.mxu0
      %v277 = vpack.c.bf16 %v274, %v271
      %v279 = vunpack.c.l.b16 %v277
      %v280 = vunpack.c.h.b16 %v277
      %v281 = vpack.c.b16 %v279, %v279
      %v282 = vpack.c.b16 %v280, %v280
      %vm285 = vcmask 27648
      %286 = vst.msk [vmem:[%s184] sm:$0xf] %vm285, %v281
      %287 = vst.msk [vmem:[%s184 + $0x4] sm:$0xf] %vm285, %v282
      %p288 = scmp.lt.s32.totalorder %s17, 1
      %s289 = scalar_select %p288, %s17, 1
      %p290 = scmp.lt.s32.totalorder %s18, 1
      %s291 = scalar_select %p290, %s18, 1
      %s292 = smul.addr %s291, 2
      %s293 = smul.addr %s289, 4
      %s294 = sadd.s32 %s292, %s293
      %s295 = smul.addr %s294, 4
      %s296 = scalar_lea.vmem %s2, %s295
      // Predicated region
      $region29: #{cnn_pre_forward.8} parent=27 // pred_check
        %p297 = pneg %p94
      $region30: #{cnn_pre_forward.8} parent=27 // pred_check_branch
        %299 = sbr.rel (%p297) target = $region32
      $region31: #{cnn_pre_forward.8} parent=27 // pred_region
        _
      $region32: #{cnn_pre_forward.8} parent=27 // pred_fallthru
        _
    $region28: #{cnn_pre_forward.8} parent=5 // pred_fallthru
      _
    %p300 = scmp.le.s32.totalorder 2, %s8
    // Predicated region
    $region33: #{cnn_pre_forward.8} parent=5 // pred_check
      %p301 = pneg %p300
    $region34: #{cnn_pre_forward.8} parent=5 // pred_check_branch
      %303 = sbr.rel (%p301) target = $region36
    $region35: #{cnn_pre_forward.8} parent=5 // pred_region
      %s304 = ssub.s32 %s8, 2
      // Predicated region
      $region37: #{cnn_pre_forward.8} parent=35 // pred_check
        %p305 = pneg %p100
      $region38: #{cnn_pre_forward.8} parent=35 // pred_check_branch
        %307 = sbr.rel (%p305) target = $region40
      $region39: #{cnn_pre_forward.8} parent=35 // pred_region
        %p308 = scmp.lt.s32.totalorder %s19, 1
        %s309 = scalar_select %p308, %s19, 1
        %p310 = scmp.lt.s32.totalorder %s20, 1
        %s311 = scalar_select %p310, %s20, 1
        %s312 = smul.addr %s311, 2
        %s313 = smul.addr %s309, 4
        %s314 = sadd.s32 %s312, %s313
        %s315 = smul.addr %s314, 4
        %s316 = scalar_lea.vmem %s2, %s315
      $region40: #{cnn_pre_forward.8} parent=35 // pred_fallthru
        _
    $region36: #{cnn_pre_forward.8} parent=5 // pred_fallthru
      _
  $region6: #{cnn_pre_forward.8} parent=0 // loop_footer
    %s12 = sadd.s32 1, %s8
  $region7: #{cnn_pre_forward.8} parent=0 // loop_footer_branch
    %7 = sbr.rel target = $region3
  $region8: #{cnn_pre_forward.8} parent=0 // loop_exit
    _

// kernel: cnn_pre_forward.7
$region0: #{cnn_pre_forward.7}
  #allocation0 [shape = 'u32[]', space=smem, size = 0x4, offset = 0x4, fixed_abs, tag = 'smem constant byte address 0x4 - core index']
  #allocation1 [shape = 'u32[144,128]{1,0:T(1,128)}', space=vmem, size = 0x12000, scoped, tag = 'internal scratch']
  #allocation2 [shape = 'f32[16,22]{1,0:T(8,128)}', space=vmem, size = 0x2000, scoped, tag = 'scratch operand']
  #allocation3 [shape = 'bf16[72,22]{1,0:T(8,128)(2,1)}', space=vmem, size = 0x4800, scoped, tag = 'scratch operand']
  %s0 = inlined_call_operand.vmem [shape: bf16[2,6,8,36], index: 0, kind: input, shape index: {}]
  %s1 = inlined_call_operand.vmem [shape: bf16[3,16,72], index: 1, kind: input, shape index: {}]
  %s2 = inlined_call_operand.vmem [shape: f32[16,1], index: 2, kind: input, shape index: {}]
  %s3 = inlined_call_operand.vmem [shape: f32[1,22], index: 3, kind: input, shape index: {}]
  %s4 = inlined_call_operand.vmem [shape: bf16[2,4,16,22], index: 4, kind: output, shape index: {}]
  %s5 = sld [smem:[#allocation0]]
  $region61: #{cnn_pre_forward.7} parent=0
    _
  %s7 = ssub.s32 1, %s5
  %s8 = scalar_select 0, %s7, %s5
  loop: start=0, step=1, limit=26
  $region2: #{cnn_pre_forward.7} parent=0 // loop_pre_header
    _
  $region3: #{cnn_pre_forward.7} parent=0 // loop_header
    %s10 = sphi 0, %s14
    %p11 = scmp.ge.s32.totalorder %s10, 26
    %s17 = sphi 0, %s36
    %s18 = sphi 0, %s32
    %s19 = sphi 0, %s28
    %s20 = sphi 0, %s17
    %s21 = sphi 0, %s18
    %s22 = sphi 0, %s19
    %s23 = sphi 0, %s20
    %s24 = sphi 0, %s21
    %s25 = sphi 0, %s22
    %s43 = sphi 0, %s45
    %s46 = sphi 0, %s43
    %s47 = sphi 0, %s46
    %s63 = sphi 0, %s47
    %s67 = sphi 0, %s67
    %s69 = sphi 0, %s67
    %s70 = sphi 0, %s69
    %s84 = sphi 0, %s70
    %s88 = sphi 0, %s88
    %s90 = sphi 0, %s88
    %s91 = sphi 0, %s90
    %s105 = sphi 0, %s91
    %s109 = sphi 0, %s109
    %s111 = sphi 0, %s109
    %s112 = sphi 0, %s111
    %s126 = sphi 0, %s112
    %s134 = sphi 0, %s136
    %s137 = sphi 0, %s134
    %s138 = sphi 0, %s137
    %s154 = sphi 0, %s138
  $region4: #{cnn_pre_forward.7} parent=0 // loop_header_branch
    %13 = sbr.rel (%p11) target = $region8
  $region5: #{cnn_pre_forward.7} parent=0 // loop_body
    %s15 = ssub.s32 %s10, 1
    %s16 = ssub.s32 %s10, 2
    %s26 = sadd.s32 1, %s19
    %p27 = scmp.ge.s32.totalorder %s26, 3
    %s28 = scalar_select %p27, 0, %s26
    %s29 = sadd.s32 1, %s18
    %s30 = scalar_select %p27, %s29, %s18
    %p31 = scmp.ge.s32.totalorder %s30, 4
    %s32 = scalar_select %p31, 0, %s30
    %s33 = sadd.s32 1, %s17
    %s34 = scalar_select %p31, %s33, %s17
    %p35 = scmp.ge.s32.totalorder %s34, 2
    %s36 = scalar_select %p35, 0, %s34
    %s37 = sadd.s32 %s18, %s19
    %s38 = sadd.s32 %s32, %s28
    %s39 = ssub.s32 %s17, %s36
    %s40 = ssub.s32 %s37, %s38
    %s41 = sor.u32 %s39, %s40
    %p42 = scmp.eq.s32.totalorder %s41, 0
    %s44 = sadd.s32 %s43, 1
    %s45 = scalar_select %p42, %s43, %s44
    %p48 = pneg %p42
    %p49 = scmp.eq.s32.totalorder %s10, 23
    %p50 = por %p48, %p49
    %p51 = scmp.ne.s32.totalorder %s43, %s46
    %p52 = scmp.eq.s32.totalorder %s10, 0
    %p53 = por %p51, %p52
    %p54 = scmp.ne.s32.totalorder %s43, %s46
    %p55 = scmp.eq.s32.totalorder %s15, 23
    %p56 = por %p54, %p55
    %p57 = scmp.ne.s32.totalorder %s46, %s47
    %p58 = scmp.eq.s32.totalorder %s15, 0
    %p59 = por %p57, %p58
    %p60 = scmp.ne.s32.totalorder %s46, %s47
    %p61 = scmp.eq.s32.totalorder %s16, 23
    %p62 = por %p60, %p61
    %p64 = scmp.ne.s32.totalorder %s47, %s63
    %p65 = scmp.eq.s32.totalorder %s16, 0
    %p66 = por %p64, %p65
    %s68 = sadd.s32 %s67, 1
    %p71 = scmp.eq.s32.totalorder %s10, 23
    %p72 = scmp.ne.s32.totalorder %s67, %s69
    %p73 = scmp.eq.s32.totalorder %s10, 0
    %p74 = por %p72, %p73
    %p75 = scmp.ne.s32.totalorder %s67, %s69
    %p76 = scmp.eq.s32.totalorder %s15, 23
    %p77 = por %p75, %p76
    %p78 = scmp.ne.s32.totalorder %s69, %s70
    %p79 = scmp.eq.s32.totalorder %s15, 0
    %p80 = por %p78, %p79
    %p81 = scmp.ne.s32.totalorder %s69, %s70
    %p82 = scmp.eq.s32.totalorder %s16, 23
    %p83 = por %p81, %p82
    %p85 = scmp.ne.s32.totalorder %s70, %s84
    %p86 = scmp.eq.s32.totalorder %s16, 0
    %p87 = por %p85, %p86
    %s89 = sadd.s32 %s88, 1
    %p92 = scmp.eq.s32.totalorder %s10, 23
    %p93 = scmp.ne.s32.totalorder %s88, %s90
    %p94 = scmp.eq.s32.totalorder %s10, 0
    %p95 = por %p93, %p94
    %p96 = scmp.ne.s32.totalorder %s88, %s90
    %p97 = scmp.eq.s32.totalorder %s15, 23
    %p98 = por %p96, %p97
    %p99 = scmp.ne.s32.totalorder %s90, %s91
    %p100 = scmp.eq.s32.totalorder %s15, 0
    %p101 = por %p99, %p100
    %p102 = scmp.ne.s32.totalorder %s90, %s91
    %p103 = scmp.eq.s32.totalorder %s16, 23
    %p104 = por %p102, %p103
    %p106 = scmp.ne.s32.totalorder %s91, %s105
    %p107 = scmp.eq.s32.totalorder %s16, 0
    %p108 = por %p106, %p107
    %s110 = sadd.s32 %s109, 1
    %p113 = scmp.eq.s32.totalorder %s10, 23
    %p114 = scmp.ne.s32.totalorder %s109, %s111
    %p115 = scmp.eq.s32.totalorder %s10, 0
    %p116 = por %p114, %p115
    %p117 = scmp.ne.s32.totalorder %s109, %s111
    %p118 = scmp.eq.s32.totalorder %s15, 23
    %p119 = por %p117, %p118
    %p120 = scmp.ne.s32.totalorder %s111, %s112
    %p121 = scmp.eq.s32.totalorder %s15, 0
    %p122 = por %p120, %p121
    %p123 = scmp.ne.s32.totalorder %s111, %s112
    %p124 = scmp.eq.s32.totalorder %s16, 23
    %p125 = por %p123, %p124
    %p127 = scmp.ne.s32.totalorder %s112, %s126
    %p128 = scmp.eq.s32.totalorder %s16, 0
    %p129 = por %p127, %p128
    %s130 = ssub.s32 %s17, %s36
    %s131 = ssub.s32 %s18, %s32
    %s132 = sor.u32 %s130, %s131
    %p133 = scmp.eq.s32.totalorder %s132, 0
    %s135 = sadd.s32 %s134, 1
    %s136 = scalar_select %p133, %s134, %s135
    %p139 = pneg %p133
    %p140 = scmp.eq.s32.totalorder %s10, 23
    %p141 = por %p139, %p140
    %p142 = scmp.ne.s32.totalorder %s134, %s137
    %p143 = scmp.eq.s32.totalorder %s10, 0
    %p144 = por %p142, %p143
    %p145 = scmp.ne.s32.totalorder %s134, %s137
    %p146 = scmp.eq.s32.totalorder %s15, 23
    %p147 = por %p145, %p146
    %p148 = scmp.ne.s32.totalorder %s137, %s138
    %p149 = scmp.eq.s32.totalorder %s15, 0
    %p150 = por %p148, %p149
    %p151 = scmp.ne.s32.totalorder %s137, %s138
    %p152 = scmp.eq.s32.totalorder %s16, 23
    %p153 = por %p151, %p152
    %p155 = scmp.ne.s32.totalorder %s138, %s154
    %p156 = scmp.eq.s32.totalorder %s16, 0
    %p157 = por %p155, %p156
    %p158 = scmp.le.s32.totalorder 1, %s10
    %p159 = scmp.lt.s32.totalorder %s10, 25
    %p160 = pnand %p158, %p159
    %p161 = pneg %p160
    // Predicated region
    $region9: #{cnn_pre_forward.7} parent=5 // pred_check
      _
    $region10: #{cnn_pre_forward.7} parent=5 // pred_check_branch
      %163 = sbr.rel (%p160) target = $region12
    $region11: #{cnn_pre_forward.7} parent=5 // pred_region
      %s164 = ssub.s32 %s10, 1
      // Predicated region
      $region13: #{cnn_pre_forward.7} parent=11 // pred_check
        %p165 = pneg %p80
      $region14: #{cnn_pre_forward.7} parent=11 // pred_check_branch
        %167 = sbr.rel (%p165) target = $region16
      $region15: #{cnn_pre_forward.7} parent=11 // pred_region
        _
      $region16: #{cnn_pre_forward.7} parent=11 // pred_fallthru
        _
      // Predicated region
      $region17: #{cnn_pre_forward.7} parent=11 // pred_check
        %p168 = pneg %p101
      $region18: #{cnn_pre_forward.7} parent=11 // pred_check_branch
        %170 = sbr.rel (%p168) target = $region20
      $region19: #{cnn_pre_forward.7} parent=11 // pred_region
        _
      $region20: #{cnn_pre_forward.7} parent=11 // pred_fallthru
        _
      // Predicated region
      $region21: #{cnn_pre_forward.7} parent=11 // pred_check
        %p171 = pneg %p122
      $region22: #{cnn_pre_forward.7} parent=11 // pred_check_branch
        %173 = sbr.rel (%p171) target = $region24
      $region23: #{cnn_pre_forward.7} parent=11 // pred_region
        _
      $region24: #{cnn_pre_forward.7} parent=11 // pred_fallthru
        _
    $region12: #{cnn_pre_forward.7} parent=5 // pred_fallthru
      _
    %p174 = scmp.lt.s32.totalorder %s10, 24
    // Predicated region
    $region25: #{cnn_pre_forward.7} parent=5 // pred_check
      %p175 = pneg %p174
    $region26: #{cnn_pre_forward.7} parent=5 // pred_check_branch
      %177 = sbr.rel (%p175) target = $region28
    $region27: #{cnn_pre_forward.7} parent=5 // pred_region
      // Predicated region
      $region29: #{cnn_pre_forward.7} parent=27 // pred_check
        %p178 = pneg %p53
      $region30: #{cnn_pre_forward.7} parent=27 // pred_check_branch
        %180 = sbr.rel (%p178) target = $region32
      $region31: #{cnn_pre_forward.7} parent=27 // pred_region
        %s181 = sadd.s32 %s18, %s19
        %p182 = scmp.lt.s32.totalorder %s17, 1
        %s183 = scalar_select %p182, %s17, 1
        %p184 = scmp.lt.s32.totalorder %s181, 5
        %s185 = scalar_select %p184, %s181, 5
        %s186 = smul.addr %s183, 6
        %s187 = sadd.s32 %s185, %s186
        %s188 = smul.addr %s187, 4
        %s189 = scalar_lea.vmem %s0, %s188
        %s190 = sadd.s32 %s18, %s19
      $region32: #{cnn_pre_forward.7} parent=27 // pred_fallthru
        _
    $region28: #{cnn_pre_forward.7} parent=5 // pred_fallthru
      _
    %p191 = scmp.le.s32.totalorder 1, %s10
    %p192 = scmp.lt.s32.totalorder %s10, 25
    %p193 = pnand %p191, %p192
    %p194 = pneg %p193
    // Predicated region
    $region33: #{cnn_pre_forward.7} parent=5 // pred_check
      _
    $region34: #{cnn_pre_forward.7} parent=5 // pred_check_branch
      %196 = sbr.rel (%p193) target = $region36
    $region35: #{cnn_pre_forward.7} parent=5 // pred_region
      %s197 = ssub.s32 %s10, 1
      %s198 = sadd.s32 %s21, %s22
      %p199 = scmp.lt.s32.totalorder %s20, 1
      %s200 = scalar_select %p199, %s20, 1
      %p201 = scmp.lt.s32.totalorder %s198, 5
      %s202 = scalar_select %p201, %s198, 5
      %s203 = smul.addr %s200, 6
      %s204 = sadd.s32 %s202, %s203
      %s205 = smul.addr %s204, 4
      %s206 = scalar_lea.vmem %s0, %s205
      %p207 = pneg %p59
      %p208 = pneg %p56
      %p209 = pneg %p80
      %p210 = pneg %p77
      %p211 = pneg %p101
      %p212 = pneg %p98
      %p213 = pneg %p122
      %p214 = pneg %p119
      %p215 = pneg %p150
      %p216 = pneg %p147
      %p217 = scmp.lt.s32.totalorder %s20, 1
      %s218 = scalar_select %p217, %s20, 1
      %p219 = scmp.lt.s32.totalorder %s21, 3
      %s220 = scalar_select %p219, %s21, 3
      %s221 = smul.addr %s220, 2
      %s222 = smul.addr %s218, 8
      %s223 = sadd.s32 %s221, %s222
      %s224 = smul.addr %s223, 4
      %s225 = scalar_lea.vmem %s4, %s224
      %s226 = sadd.s32 %s21, %s22
      %p227 = scmp.lt.s32.totalorder %s20, 1
      %s228 = scalar_select %p227, %s20, 1
      %p229 = scmp.lt.s32.totalorder %s226, 5
      %s230 = scalar_select %p229, %s226, 5
      %s231 = smul.addr %s228, 6
      %s232 = sadd.s32 %s230, %s231
      %s233 = smul.addr %s232, 4
      %s234 = scalar_lea.vmem %s0, %s233
      %s235 = sadd.s32 %s21, %s22
      %p236 = scmp.lt.s32.totalorder %s20, 1
      %s237 = scalar_select %p236, %s20, 1
      %p238 = scmp.lt.s32.totalorder %s21, 3
      %s239 = scalar_select %p238, %s21, 3
      %s240 = smul.addr %s239, 2
      %s241 = smul.addr %s237, 8
      %s242 = sadd.s32 %s240, %s241
      %s243 = smul.addr %s242, 4
      %s244 = scalar_lea.vmem %s4, %s243
      %v246 = vld [vmem:[%s234] sm:$0xf]
      %vm247 = vcmask 175104
      %248 = vst.msk [vmem:[#allocation3] sm:$0xf] %vm247, %v246
      %250 = vrot.lane.b32.xlu0 %v246, 127
      %v251 = vpop.permute.xlu0 %250
      %253 = vst.msk [vmem:[#allocation3 + $0x4] sm:$0xf] %vm247, %v251
      %254 = vrot.lane.b32.xlu0 %v246, 126
      %v255 = vpop.permute.xlu0 %254
      %257 = vst.msk [vmem:[#allocation3 + $0x8] sm:$0xf] %vm247, %v255
      %258 = vrot.lane.b32.xlu0 %v246, 122
      %v259 = vpop.permute.xlu0 %258
      %261 = vst.msk [vmem:[#allocation3 + $0xc] sm:$0xf] %vm247, %v259
      %262 = vrot.lane.b32.xlu0 %v246, 121
      %v263 = vpop.permute.xlu0 %262
      %265 = vst.msk [vmem:[#allocation3 + $0x10] sm:$0xf] %vm247, %v263
      %266 = vrot.lane.b32.xlu0 %v246, 120
      %v267 = vpop.permute.xlu0 %266
      %269 = vst.msk [vmem:[#allocation3 + $0x14] sm:$0xf] %vm247, %v267
      %270 = vrot.lane.b32.xlu0 %v246, 116
      %v271 = vpop.permute.xlu0 %270
      %273 = vst.msk [vmem:[#allocation3 + $0x18] sm:$0xf] %vm247, %v271
      %274 = vrot.lane.b32.xlu0 %v246, 115
      %v275 = vpop.permute.xlu0 %274
      %277 = vst.msk [vmem:[#allocation3 + $0x1c] sm:$0xf] %vm247, %v275
      %278 = vrot.lane.b32.xlu0 %v246, 114
      %v279 = vpop.permute.xlu0 %278
      %281 = vst.msk [vmem:[#allocation3 + $0x20] sm:$0xf] %vm247, %v279
      %s282 = smul.u32 %s22, 2
      %s283 = smul.addr %s282, 4
      %s284 = scalar_lea.vmem %s1, %s283
      %v285 = vld [vmem:[%s284] sm:$0xf]
      %v286 = vld [vmem:[%s284 + $0x4] sm:$0xf]
      %v287 = vld [vmem:[#allocation3] sm:$0xf]
      %v288 = vld [vmem:[#allocation3 + $0x4] sm:$0xf]
      %v289 = vld [vmem:[#allocation3 + $0x8] sm:$0xf]
      %v290 = vld [vmem:[#allocation3 + $0xc] sm:$0xf]
      %v291 = vld [vmem:[#allocation3 + $0x10] sm:$0xf]
      %v292 = vld [vmem:[#allocation3 + $0x14] sm:$0xf]
      %v293 = vld [vmem:[#allocation3 + $0x18] sm:$0xf]
      %v294 = vld [vmem:[#allocation3 + $0x1c] sm:$0xf]
      %v295 = vld [vmem:[#allocation3 + $0x20] sm:$0xf]
      %v298 = vunpack.c.l.b16 %v285
      %v299 = vunpack.c.l.b16 %v286
      %v300 = vpack.c.b16 %v299, %v298
      %v310 = vunpack.c.l.b16 %v287
      %v311 = vunpack.c.l.b16 %v288
      %v312 = vunpack.c.l.b16 %v289
      %v313 = vunpack.c.l.b16 %v290
      %v314 = vunpack.c.l.b16 %v291
      %v315 = vunpack.c.l.b16 %v292
      %v316 = vunpack.c.l.b16 %v293
      %v317 = vunpack.c.l.b16 %v294
      %v318 = vunpack.c.l.b16 %v295
      %v319 = vpack.c.b16 %v311, %v310
      %v320 = vpack.c.b16 %v313, %v312
      %v321 = vpack.c.b16 %v315, %v314
      %v322 = vpack.c.b16 %v317, %v316
      %v323 = vpack.c.b16 %v318, %v318
      %vm328 = vcmask 588800
      %v330 = vsel %vm328, %v300, 0
      %vm332 = vcmask 1043456
      %v334 = vsel %vm332, %v323, 0
      %336 = vmatprep.subr.bf16.mxu0 0
      %337 = vmatpush1.bf16.msra.mxu0 %v319
      %338 = vmatprep.subr.bf16.mxu0 0
      %339 = vmatpush1.bf16.msra.mxu0 %v320
      %340 = vmatprep.subr.bf16.mxu0 0
      %341 = vmatpush1.bf16.msra.mxu0 %v321
      %342 = vmatprep.subr.bf16.mxu0 0
      %343 = vmatpush1.bf16.msra.mxu0 %v322
      %344 = vmatprep.subr.bf16.mxu0 0
      %345 = vmatpush1.bf16.msra.mxu0 %v334
      %346 = vmatprep.subr.bf16.mxu0 0
      %347 = vmatpush1.bf16.msra.mxu0 0
      %348 = vmatprep.subr.bf16.mxu0 0
      %349 = vmatpush1.bf16.msra.mxu0 0
      %350 = vmatprep.subr.bf16.mxu0 0
      %351 = vmatpush1.bf16.msra.mxu0 0
      %352 = vmatprep.subr.bf16.mxu0 0
      %353 = vmatpush1.bf16.msra.mxu0 0
      %354 = vmatprep.subr.bf16.mxu0 0
      %355 = vmatpush1.bf16.msra.mxu0 0
      %356 = vmatprep.subr.bf16.mxu0 0
      %357 = vmatpush1.bf16.msra.mxu0 0
      %358 = vmatprep.subr.bf16.mxu0 0
      %359 = vmatpush1.bf16.msra.mxu0 0
      %360 = vmatprep.subr.bf16.mxu0 0
      %361 = vmatpush1.bf16.msra.mxu0 0
      %362 = vmatprep.subr.bf16.mxu0 0
      %363 = vmatpush1.bf16.msra.mxu0 0
      %364 = vmatprep.subr.bf16.mxu0 0
      %365 = vmatpush1.bf16.msra.mxu0 0
      %366 = vmatprep.subr.bf16.mxu0 0
      %367 = vmatpush1.bf16.msra.mxu0 0
      %368 = vmatprep.mubr.bf16.mxu0 0
      %369 = vmatmul.mubr.bf16.gmra.mrb[0].mxu0 %v330
      %v370 = vpop.f32.mrb[0].mxu0
      %v371 = vadd.f32 0.0, %v370
      %v372 = vpop.f32.mrb[0].mxu0
      %v373 = vpop.f32.mrb[0].mxu0
      %v374 = vadd.f32 0.0, %v373
      %v375 = vpop.f32.mrb[0].mxu0
      %376 = vdwg.mxu0
      %p377 = scmp.eq.s32.totalorder %s22, 0
      // Predicated region
      $region37: #{cnn_pre_forward.7} parent=35 // pred_check
        %p378 = pneg %p377
      $region38: #{cnn_pre_forward.7} parent=35 // pred_check_branch
        %380 = sbr.rel (%p378) target = $region40
      $region39: #{cnn_pre_forward.7} parent=35 // pred_region
        %vm381 = vcmask 179200
        %382 = vst.msk [vmem:[#allocation2] sm:$0xff] %vm381, %v371
        %383 = vst.msk [vmem:[#allocation2 + $0x8] sm:$0xff] %vm381, %v374
      $region40: #{cnn_pre_forward.7} parent=35 // pred_fallthru
        _
      %p384 = scmp.ne.s32.totalorder %s22, 0
      // Predicated region
      $region41: #{cnn_pre_forward.7} parent=35 // pred_check
        %p385 = pneg %p384
      $region42: #{cnn_pre_forward.7} parent=35 // pred_check_branch
        %387 = sbr.rel (%p385) target = $region44
      $region43: #{cnn_pre_forward.7} parent=35 // pred_region
        %v388 = vld [vmem:[#allocation2] sm:$0xff]
        %v389 = vld [vmem:[#allocation2 + $0x8] sm:$0xff]
        %v390 = vadd.f32 %v388, %v371
        %v391 = vadd.f32 %v389, %v374
        %vm392 = vcmask 179200
        %393 = vst.msk [vmem:[#allocation2] sm:$0xff] %vm392, %v390
        %394 = vst.msk [vmem:[#allocation2 + $0x8] sm:$0xff] %vm392, %v391
      $region44: #{cnn_pre_forward.7} parent=35 // pred_fallthru
        _
      %p395 = scmp.eq.s32.totalorder %s22, 2
      // Predicated region
      $region45: #{cnn_pre_forward.7} parent=35 // pred_check
        %p396 = pneg %p395
      $region46: #{cnn_pre_forward.7} parent=35 // pred_check_branch
        %398 = sbr.rel (%p396) target = $region48
      $region47: #{cnn_pre_forward.7} parent=35 // pred_region
        %v399 = vld [vmem:[#allocation2] sm:$0xff]
        %v400 = vld [vmem:[#allocation2 + $0x8] sm:$0xff]
        %v401 = vld [vmem:[%s2] sm:$0xff]
        %v402 = vld [vmem:[%s2 + $0x8] sm:$0xff]
        %404 = vset.pattern.permute.xlu0 0
        %405 = vperm.xlu0 %404, %v401
        %v406 = vpop.permute.xlu0 %405
        %409 = vset.pattern.permute.xlu0 0
        %410 = vperm.xlu0 %409, %v402
        %v411 = vpop.permute.xlu0 %410
        %v413 = vadd.f32 %v399, %v406
        %v414 = vadd.f32 %v400, %v411
        %vm415 = vcmp.gt.f32.partialorder %v413, 0.0
        %vm416 = vcmp.gt.f32.partialorder %v414, 0.0
        %v417 = vmul.f32 %v413, 0.01
        %v418 = vmul.f32 %v414, 0.01
        %v419 = vsel %vm415, %v413, %v417
        %v420 = vsel %vm416, %v414, %v418
        %v421 = vld [vmem:[%s3] sm:$0x1]
        %v423 = vlaneseq
        %v424 = vshrl.u32 %v423, 7
        %v425 = vsub.s32 0, %v424
        %v426 = vrot.slane %v421, %v425
        %v428 = vmul.f32 %v419, %v426
        %v429 = vmul.f32 %v420, %v426
        %v430 = vpack.c.bf16 %v429, %v428
        %v432 = vunpack.c.l.b16 %v430
        %v433 = vunpack.c.h.b16 %v430
        %v434 = vpack.c.b16 %v432, %v432
        %v435 = vpack.c.b16 %v433, %v433
        %438 = vst.msk [vmem:[%s244] sm:$0xf] %vm247, %v434
        %439 = vst.msk [vmem:[%s244 + $0x4] sm:$0xf] %vm247, %v435
      $region48: #{cnn_pre_forward.7} parent=35 // pred_fallthru
        _
      %p440 = scmp.lt.s32.totalorder %s20, 1
      %s441 = scalar_select %p440, %s20, 1
      %p442 = scmp.lt.s32.totalorder %s21, 3
      %s443 = scalar_select %p442, %s21, 3
      %s444 = smul.addr %s443, 2
      %s445 = smul.addr %s441, 8
      %s446 = sadd.s32 %s444, %s445
      %s447 = smul.addr %s446, 4
      %s448 = scalar_lea.vmem %s4, %s447
      // Predicated region
      $region49: #{cnn_pre_forward.7} parent=35 // pred_check
        %p449 = pneg %p147
      $region50: #{cnn_pre_forward.7} parent=35 // pred_check_branch
        %451 = sbr.rel (%p449) target = $region52
      $region51: #{cnn_pre_forward.7} parent=35 // pred_region
        _
      $region52: #{cnn_pre_forward.7} parent=35 // pred_fallthru
        _
    $region36: #{cnn_pre_forward.7} parent=5 // pred_fallthru
      _
    %p452 = scmp.le.s32.totalorder 2, %s10
    // Predicated region
    $region53: #{cnn_pre_forward.7} parent=5 // pred_check
      %p453 = pneg %p452
    $region54: #{cnn_pre_forward.7} parent=5 // pred_check_branch
      %455 = sbr.rel (%p453) target = $region56
    $region55: #{cnn_pre_forward.7} parent=5 // pred_region
      %s456 = ssub.s32 %s10, 2
      // Predicated region
      $region57: #{cnn_pre_forward.7} parent=55 // pred_check
        %p457 = pneg %p153
      $region58: #{cnn_pre_forward.7} parent=55 // pred_check_branch
        %459 = sbr.rel (%p457) target = $region60
      $region59: #{cnn_pre_forward.7} parent=55 // pred_region
        %p460 = scmp.lt.s32.totalorder %s23, 1
        %s461 = scalar_select %p460, %s23, 1
        %p462 = scmp.lt.s32.totalorder %s24, 3
        %s463 = scalar_select %p462, %s24, 3
        %s464 = smul.addr %s463, 2
        %s465 = smul.addr %s461, 8
        %s466 = sadd.s32 %s464, %s465
        %s467 = smul.addr %s466, 4
        %s468 = scalar_lea.vmem %s4, %s467
      $region60: #{cnn_pre_forward.7} parent=55 // pred_fallthru
        _
    $region56: #{cnn_pre_forward.7} parent=5 // pred_fallthru
      _
  $region6: #{cnn_pre_forward.7} parent=0 // loop_footer
    %s14 = sadd.s32 1, %s10
  $region7: #{cnn_pre_forward.7} parent=0 // loop_footer_branch
    %9 = sbr.rel target = $region3
  $region8: #{cnn_pre_forward.7} parent=0 // loop_exit
    _

// kernel: cnn_pre_forward.9
$region0: #{cnn_pre_forward.9}
  #allocation0 [shape = 'u32[]', space=smem, size = 0x4, offset = 0x4, fixed_abs, tag = 'smem constant byte address 0x4 - core index']
  #allocation1 [shape = 'u32[144,128]{1,0:T(1,128)}', space=vmem, size = 0x12000, scoped, tag = 'internal scratch']
  #allocation2 [shape = 'f32[2,64]{1,0:T(2,128)}', space=vmem, size = 0x400, scoped, tag = 'scratch operand']
  #allocation3 [shape = 'f32[1,1]{1,0:T(1,128)S(1)}', space=vmem, size = 0x200, scoped, tag = 'scoped memory for cnn_pre_forward.9']
  %s0 = inlined_call_operand.vmem [shape: bf16[2,128], index: 0, kind: input, shape index: {}]
  %s1 = inlined_call_operand.vmem [shape: bf16[128,64], index: 1, kind: input, shape index: {}]
  %s2 = inlined_call_operand.vmem [shape: f32[1,64], index: 2, kind: input, shape index: {}]
  %s3 = inlined_call_operand.vmem [shape: f32[64,1], index: 3, kind: input, shape index: {}]
  %s4 = inlined_call_operand.<no memory space> [shape: f32[1,1], index: 4, kind: input, shape index: {}]
  %s5 = inlined_call_operand.vmem [shape: f32[2,1], index: 5, kind: output, shape index: {}]
  %s6 = sld [smem:[#allocation0]]
  $region42: #{cnn_pre_forward.9} parent=0
    _
  %s8 = ssub.s32 1, %s6
  %s9 = scalar_select 0, %s8, %s6
  %v10 = vstv %s4
  %11 = vst [vmem:[#allocation3] sm:$0x1] %v10
  // Predicated region
  $region2: #{cnn_pre_forward.9} parent=0 // pred_check
    _
  $region3: #{cnn_pre_forward.9} parent=0 // pred_check_branch
    %13 = sbr.rel (0) target = $region5
  $region4: #{cnn_pre_forward.9} parent=0 // pred_region
    _
  $region5: #{cnn_pre_forward.9} parent=0 // pred_fallthru
    _
  // Predicated region
  $region6: #{cnn_pre_forward.9} parent=0 // pred_check
    _
  $region7: #{cnn_pre_forward.9} parent=0 // pred_check_branch
    %15 = sbr.rel (0) target = $region9
  $region8: #{cnn_pre_forward.9} parent=0 // pred_region
    _
  $region9: #{cnn_pre_forward.9} parent=0 // pred_fallthru
    _
  // Predicated region
  $region10: #{cnn_pre_forward.9} parent=0 // pred_check
    _
  $region11: #{cnn_pre_forward.9} parent=0 // pred_check_branch
    %17 = sbr.rel (0) target = $region13
  $region12: #{cnn_pre_forward.9} parent=0 // pred_region
    _
  $region13: #{cnn_pre_forward.9} parent=0 // pred_fallthru
    _
  // Predicated region
  $region14: #{cnn_pre_forward.9} parent=0 // pred_check
    _
  $region15: #{cnn_pre_forward.9} parent=0 // pred_check_branch
    %19 = sbr.rel (0) target = $region17
  $region16: #{cnn_pre_forward.9} parent=0 // pred_region
    _
  $region17: #{cnn_pre_forward.9} parent=0 // pred_fallthru
    _
  // Predicated region
  $region18: #{cnn_pre_forward.9} parent=0 // pred_check
    _
  $region19: #{cnn_pre_forward.9} parent=0 // pred_check_branch
    %21 = sbr.rel (0) target = $region21
  $region20: #{cnn_pre_forward.9} parent=0 // pred_region
    _
  $region21: #{cnn_pre_forward.9} parent=0 // pred_fallthru
    _
  %v23 = vld [vmem:[%s0] sm:$0x1]
  %v24 = vld [vmem:[%s1] sm:$0xf]
  %v25 = vld [vmem:[%s1 + $0x4] sm:$0xf]
  %v26 = vld [vmem:[%s1 + $0x8] sm:$0xf]
  %v27 = vld [vmem:[%s1 + $0xc] sm:$0xf]
  %v28 = vld [vmem:[%s1 + $0x10] sm:$0xf]
  %v29 = vld [vmem:[%s1 + $0x14] sm:$0xf]
  %v30 = vld [vmem:[%s1 + $0x18] sm:$0xf]
  %v31 = vld [vmem:[%s1 + $0x1c] sm:$0xf]
  %v32 = vld [vmem:[%s1 + $0x20] sm:$0xf]
  %v33 = vld [vmem:[%s1 + $0x24] sm:$0xf]
  %v34 = vld [vmem:[%s1 + $0x28] sm:$0xf]
  %v35 = vld [vmem:[%s1 + $0x2c] sm:$0xf]
  %v36 = vld [vmem:[%s1 + $0x30] sm:$0xf]
  %v37 = vld [vmem:[%s1 + $0x34] sm:$0xf]
  %v38 = vld [vmem:[%s1 + $0x38] sm:$0xf]
  %v39 = vld [vmem:[%s1 + $0x3c] sm:$0xf]
  %v56 = vunpack.c.l.b16 %v24
  %v57 = vunpack.c.l.b16 %v25
  %v58 = vunpack.c.l.b16 %v26
  %v59 = vunpack.c.l.b16 %v27
  %v60 = vunpack.c.l.b16 %v28
  %v61 = vunpack.c.l.b16 %v29
  %v62 = vunpack.c.l.b16 %v30
  %v63 = vunpack.c.l.b16 %v31
  %v64 = vunpack.c.l.b16 %v32
  %v65 = vunpack.c.l.b16 %v33
  %v66 = vunpack.c.l.b16 %v34
  %v67 = vunpack.c.l.b16 %v35
  %v68 = vunpack.c.l.b16 %v36
  %v69 = vunpack.c.l.b16 %v37
  %v70 = vunpack.c.l.b16 %v38
  %v71 = vunpack.c.l.b16 %v39
  %v72 = vpack.c.b16 %v57, %v56
  %v73 = vpack.c.b16 %v59, %v58
  %v74 = vpack.c.b16 %v61, %v60
  %v75 = vpack.c.b16 %v63, %v62
  %v76 = vpack.c.b16 %v65, %v64
  %v77 = vpack.c.b16 %v67, %v66
  %v78 = vpack.c.b16 %v69, %v68
  %v79 = vpack.c.b16 %v71, %v70
  %88 = vmatprep.subr.bf16.mxu0 0
  %89 = vmatpush1.bf16.msra.mxu0 %v72
  %90 = vmatprep.subr.bf16.mxu0 0
  %91 = vmatpush1.bf16.msra.mxu0 %v73
  %92 = vmatprep.subr.bf16.mxu0 0
  %93 = vmatpush1.bf16.msra.mxu0 %v74
  %94 = vmatprep.subr.bf16.mxu0 0
  %95 = vmatpush1.bf16.msra.mxu0 %v75
  %96 = vmatprep.subr.bf16.mxu0 0
  %97 = vmatpush1.bf16.msra.mxu0 %v76
  %98 = vmatprep.subr.bf16.mxu0 0
  %99 = vmatpush1.bf16.msra.mxu0 %v77
  %100 = vmatprep.subr.bf16.mxu0 0
  %101 = vmatpush1.bf16.msra.mxu0 %v78
  %102 = vmatprep.subr.bf16.mxu0 0
  %103 = vmatpush1.bf16.msra.mxu0 %v79
  %104 = vmatprep.subr.bf16.mxu0 0
  %105 = vmatpush1.bf16.msra.mxu0 0
  %106 = vmatprep.subr.bf16.mxu0 0
  %107 = vmatpush1.bf16.msra.mxu0 0
  %108 = vmatprep.subr.bf16.mxu0 0
  %109 = vmatpush1.bf16.msra.mxu0 0
  %110 = vmatprep.subr.bf16.mxu0 0
  %111 = vmatpush1.bf16.msra.mxu0 0
  %112 = vmatprep.subr.bf16.mxu0 0
  %113 = vmatpush1.bf16.msra.mxu0 0
  %114 = vmatprep.subr.bf16.mxu0 0
  %115 = vmatpush1.bf16.msra.mxu0 0
  %116 = vmatprep.subr.bf16.mxu0 0
  %117 = vmatpush1.bf16.msra.mxu0 0
  %118 = vmatprep.subr.bf16.mxu0 0
  %119 = vmatpush1.bf16.msra.mxu0 0
  %120 = vmatprep.mubr.bf16.mxu0 0
  %121 = vmatmul.mubr.bf16.gmra.mrb[0].mxu0 %v23
  %v122 = vpop.f32.mrb[0].mxu0
  %v123 = vadd.f32 0.0, %v122
  %v124 = vpop.f32.mrb[0].mxu0
  %v125 = vpop.f32.mrb[0].mxu0
  %v126 = vpop.f32.mrb[0].mxu0
  %127 = vdwg.mxu0
  %p128 = scmp.eq.s32.totalorder 0, 0
  // Predicated region
  $region22: #{cnn_pre_forward.9} parent=0 // pred_check
    %p129 = pneg %p128
  $region23: #{cnn_pre_forward.9} parent=0 // pred_check_branch
    %131 = sbr.rel (%p129) target = $region25
  $region24: #{cnn_pre_forward.9} parent=0 // pred_region
    %vm132 = vcmask 517120
    %133 = vst.msk [vmem:[#allocation2] sm:$0x3] %vm132, %v123
  $region25: #{cnn_pre_forward.9} parent=0 // pred_fallthru
    _
  %p134 = scmp.ne.s32.totalorder 0, 0
  // Predicated region
  $region26: #{cnn_pre_forward.9} parent=0 // pred_check
    %p135 = pneg %p134
  $region27: #{cnn_pre_forward.9} parent=0 // pred_check_branch
    %137 = sbr.rel (%p135) target = $region29
  $region28: #{cnn_pre_forward.9} parent=0 // pred_region
    %v138 = vld [vmem:[#allocation2] sm:$0x3]
    %v139 = vadd.f32 %v138, %v123
    %vm140 = vcmask 517120
    %141 = vst.msk [vmem:[#allocation2] sm:$0x3] %vm140, %v139
  $region29: #{cnn_pre_forward.9} parent=0 // pred_fallthru
    _
  // Predicated region
  $region30: #{cnn_pre_forward.9} parent=0 // pred_check
    %p142 = pneg %p128
  $region31: #{cnn_pre_forward.9} parent=0 // pred_check_branch
    %144 = sbr.rel (%p142) target = $region33
  $region32: #{cnn_pre_forward.9} parent=0 // pred_region
    %v145 = vld [vmem:[#allocation2] sm:$0x3]
    %v146 = vld [vmem:[%s2] sm:$0x1]
    %v148 = vlaneseq
    %v149 = vshrl.u32 %v148, 7
    %v150 = vsub.s32 0, %v149
    %v151 = vrot.slane %v146, %v150
    %v153 = vadd.f32 %v145, %v151
    %vm154 = vcmp.gt.f32.partialorder %v153, 0.0
    %v155 = vmul.f32 %v153, 0.01
    %v156 = vsel %vm154, %v153, %v155
    %v157 = vld [vmem:[%s3] sm:$0xff]
    %v158 = vld [vmem:[%s3 + $0x8] sm:$0xff]
    %v159 = vld [vmem:[%s3 + $0x10] sm:$0xff]
    %v160 = vld [vmem:[%s3 + $0x18] sm:$0xff]
    %v161 = vld [vmem:[%s3 + $0x20] sm:$0xff]
    %v162 = vld [vmem:[%s3 + $0x28] sm:$0xff]
    %v163 = vld [vmem:[%s3 + $0x30] sm:$0xff]
    %v164 = vld [vmem:[%s3 + $0x38] sm:$0xff]
    %v165 = vld [vmem:[#allocation3] sm:$0x1]
    %v167 = vlaneseq
    %v168 = vshrl.u32 %v167, 7
    %v169 = vsub.s32 0, %v168
    %v170 = vrot.slane %v165, %v169
    %vm172 = vcmask 523264
    %v174 = vsel %vm172, %v156, 0
    %176 = vmatprep.subr.mxu0 0.0
    %177 = vmatpush1.msra.mxu0 %v157
    %178 = vmatprep.subr.mxu0 0.0
    %179 = vmatpush1.msra.mxu0 %v158
    %180 = vmatprep.subr.mxu0 0.0
    %181 = vmatpush1.msra.mxu0 %v159
    %182 = vmatprep.subr.mxu0 0.0
    %183 = vmatpush1.msra.mxu0 %v160
    %184 = vmatprep.subr.mxu0 0.0
    %185 = vmatpush1.msra.mxu0 %v161
    %186 = vmatprep.subr.mxu0 0.0
    %187 = vmatpush1.msra.mxu0 %v162
    %188 = vmatprep.subr.mxu0 0.0
    %189 = vmatpush1.msra.mxu0 %v163
    %190 = vmatprep.subr.mxu0 0.0
    %191 = vmatpush1.msra.mxu0 %v164
    %192 = vmatprep.subr.mxu0 0.0
    %193 = vmatpush1.msra.mxu0 0.0
    %194 = vmatprep.subr.mxu0 0.0
    %195 = vmatpush1.msra.mxu0 0.0
    %196 = vmatprep.subr.mxu0 0.0
    %197 = vmatpush1.msra.mxu0 0.0
    %198 = vmatprep.subr.mxu0 0.0
    %199 = vmatpush1.msra.mxu0 0.0
    %200 = vmatprep.subr.mxu0 0.0
    %201 = vmatpush1.msra.mxu0 0.0
    %202 = vmatprep.subr.mxu0 0.0
    %203 = vmatpush1.msra.mxu0 0.0
    %204 = vmatprep.subr.mxu0 0.0
    %205 = vmatpush1.msra.mxu0 0.0
    %206 = vmatprep.subr.mxu0 0.0
    %207 = vmatpush1.msra.mxu0 0.0
    %208 = vmatprep.subr.mxu0 0.0
    %209 = vmatpush1.msra.mxu0 0.0
    %210 = vmatprep.subr.mxu0 0.0
    %211 = vmatpush1.msra.mxu0 0.0
    %212 = vmatprep.subr.mxu0 0.0
    %213 = vmatpush1.msra.mxu0 0.0
    %214 = vmatprep.subr.mxu0 0.0
    %215 = vmatpush1.msra.mxu0 0.0
    %216 = vmatprep.subr.mxu0 0.0
    %217 = vmatpush1.msra.mxu0 0.0
    %218 = vmatprep.subr.mxu0 0.0
    %219 = vmatpush1.msra.mxu0 0.0
    %220 = vmatprep.subr.mxu0 0.0
    %221 = vmatpush1.msra.mxu0 0.0
    %222 = vmatprep.subr.mxu0 0.0
    %223 = vmatpush1.msra.mxu0 0.0
    %224 = vmatprep.subr.mxu0 0.0
    %225 = vmatpush1.msra.mxu0 0.0
    %226 = vmatprep.subr.mxu0 0.0
    %227 = vmatpush1.msra.mxu0 0.0
    %228 = vmatprep.subr.mxu0 0.0
    %229 = vmatpush1.msra.mxu0 0.0
    %230 = vmatprep.subr.mxu0 0.0
    %231 = vmatpush1.msra.mxu0 0.0
    %232 = vmatprep.subr.mxu0 0.0
    %233 = vmatpush1.msra.mxu0 0.0
    %234 = vmatprep.subr.mxu0 0.0
    %235 = vmatpush1.msra.mxu0 0.0
    %236 = vmatprep.subr.mxu0 0.0
    %237 = vmatpush1.msra.mxu0 0.0
    %238 = vmatprep.subr.mxu0 0.0
    %239 = vmatpush1.msra.mxu0 0.0
    %240 = vmatprep.mubr.f32.mxu0 0.0
    %241 = vmatmul.mubr.f32.gmra.mrb[0].mxu0 %v174
    %v242 = vpop.f32.mrb[0].mxu0
    %v243 = vadd.f32 %v170, %v242
    %v244 = vpop.f32.mrb[0].mxu0
    %245 = vdwg.mxu0
    %v246 = vand.u32 2147483647, %v243
    %v247 = vsub.f32 0.0, %v246
    %v248 = vmul.f32 %v247, 1.442695
    %v249 = vpow.pop %v248
    %vm250 = vcmp.ge.f32.partialorder %v243, 0.0
    %v251 = vadd.f32 %v249, 1.0
    %v252 = vrcp.pop %v251
    %v253 = vmul.f32 1.0, %v252
    %v254 = vmul.f32 %v249, %v252
    %v255 = vsel %vm250, %v253, %v254
    %vm256 = vcmask 1024
    %257 = vst.msk [vmem:[%s5] sm:$0x3] %vm256, %v255
  $region33: #{cnn_pre_forward.9} parent=0 // pred_fallthru
    _
  // Predicated region
  $region34: #{cnn_pre_forward.9} parent=0 // pred_check
    _
  $region35: #{cnn_pre_forward.9} parent=0 // pred_check_branch
    %259 = sbr.rel (0) target = $region37
  $region36: #{cnn_pre_forward.9} parent=0 // pred_region
    _
  $region37: #{cnn_pre_forward.9} parent=0 // pred_fallthru
    _
  // Predicated region
  $region38: #{cnn_pre_forward.9} parent=0 // pred_check
    _
  $region39: #{cnn_pre_forward.9} parent=0 // pred_check_branch
    %261 = sbr.rel (0) target = $region41
  $region40: #{cnn_pre_forward.9} parent=0 // pred_region
    _
  $region41: #{cnn_pre_forward.9} parent=0 // pred_fallthru
    _

</llo_original>
